<compile_context>
chip_gen: v5e
topology: v5e:2x2
jax: 0.10.0
libtpu: 0.0.40
codegen_flags: <defaults>
</compile_context>

<pallas_src>
import numpy as np
import jax
import jax.numpy as jnp
from jax.experimental import pallas as pl
from jax.experimental.pallas import tpu as pltpu

# ---------------- scaled-down dimensions (orig values in comments) ----------
NUM_CLASSES    = 16   # orig 151
NUM_RELS       = 8    # orig 51
EMBED_DIM      = 32   # orig 200
POS_DIM        = 32   # orig 128
FUSE_DIM       = 64   # orig 4096 (obj_dim / pooling_dim analogue)
EDGE_COORD_DIM = 32   # orig 256
N_OBJ          = 8    # number of detected objects
N_IMG          = 2    # batch of images

LANE = 128            # lane-dense padded width for every feature / output dim
NEG  = -1e30          # padding value for logits / argmax & softmax masking


# =============================== fused kernel ===============================

def fused_forward_kernel(
    # per-forward data
    logits_ref,   # [N, LANE]  obj_logits, cols >= C padded with NEG
    boxes_ref,    # [N, LANE]  cols 0..3 = x1,y1,x2,y2 (rest 0)
    imcol_ref,    # [N, 1]     int32 image index per object (-1 on padded rows)
    imrow_ref,    # [1, N]     int32 image index per object (row layout)
    lbl_ref,      # [N, 1]     int32 gt labels (multi-hot only)
    rel_ref,      # [R, 3]     int32 (im, subj, obj)
    gfeat_ref,    # [I, LANE]  global image feature (zero padded), f32
    union_ref,    # [R, LANE]  union visual rep, bf16 (zero padded)
    # prepared (BN-folded, split, zero-padded) weights
    embw_ref,     # [LANE, LANE] bf16
    pw_ref,       # [8, LANE]    f32, rows 0..3 used (VPU FMA rows)
    pb_ref,       # [1, LANE]    f32
    fwe_ref,      # [LANE, LANE] bf16
    fwp_ref,      # [LANE, LANE] bf16
    fb_ref,       # [1, LANE]    f32
    dw_ref,       # [LANE, LANE] bf16
    db_ref,       # [1, LANE]    f32
    glw_ref,      # [LANE, LANE] bf16
    glb_ref,      # [1, LANE]    f32
    addw_ref,     # [LANE, LANE] bf16, cols 0,1 = sub/obj additive weights
    addb_ref,     # [1, LANE]    f32,  cols 0,1 = sub/obj additive biases
    cw_ref,       # [8, LANE]    f32, rows 0..4 used (edge coord linear)
    cb_ref,       # [1, LANE]    f32
    rwp_ref,      # [LANE, LANE] bf16
    rwe_ref,      # [LANE, LANE] bf16
    rb_ref,       # [1, LANE]    f32
    freq_ref,     # [C*C, LANE]  f32 (TODO(synk): HBM + gathered at prod dims)
    # outputs (lane-dense, sliced in wrapper)
    objd_ref,     # [N, LANE]  obj_dists
    objm_ref,     # [N, LANE]  lane0 = obj_pred (f32), lane1 = obj_score
    gld_ref,      # [I, LANE]  global_dists
    mh_ref,       # [I, LANE]  multi_hot
    reld_ref,     # [R, LANE]  rel_dists
    relp_ref,     # [R, LANE]  rel_rep (softmax of rel_dists)
):
    f32 = jnp.float32
    bf16 = jnp.bfloat16
    N, P = logits_ref.shape
    IPAD = gfeat_ref.shape[0]
    R = rel_ref.shape[0]
    C = NUM_CLASSES

    # ---------------- LinearizedContext (eval: Dropout=id, BN folded) -------
    logits = logits_ref[...]
    m = jnp.max(logits, axis=-1, keepdims=True)
    e = jnp.exp(logits - m)                         # padded cols -> exp(NEG)=0
    probs = e * pl.reciprocal(jnp.sum(e, axis=-1, keepdims=True), approx=True)
    obj_embed = jnp.dot(probs.astype(bf16), embw_ref[...],
                        preferred_element_type=f32)

    boxes = boxes_ref[...]
    x1 = boxes[:, 0:1]; y1 = boxes[:, 1:2]; x2 = boxes[:, 2:3]; y2 = boxes[:, 3:4]
    bw = x2 - x1 + 1.0; bh = y2 - y1 + 1.0
    cx = (x1 + x2) * 0.5; cy = (y1 + y2) * 0.5
    # pos_embed: (cx,cy,w,h) @ W_pos as 4 broadcast FMAs (avoids K=4 matmul)
    pos = (cx * pw_ref[0:1, :] + cy * pw_ref[1:2, :]
           + bw * pw_ref[2:3, :] + bh * pw_ref[3:4, :] + pb_ref[...])
    pos = jnp.maximum(pos, 0.0)                     # ReLU; Dropout(eval)=id

    node = (jnp.dot(obj_embed.astype(bf16), fwe_ref[...], preferred_element_type=f32)
            + jnp.dot(pos.astype(bf16), fwp_ref[...], preferred_element_type=f32)
            + fb_ref[...])
    node = jnp.maximum(node, 0.0)
    node_bf = node.astype(bf16)

    # NOTE: original forward calls `self.context.decoder_lin` (a typo); the
    #       defined layer `decoder_lin_` is used here.
    obj_dists = jnp.dot(node_bf, dw_ref[...], preferred_element_type=f32) + db_ref[...]
    objd_ref[...] = obj_dists

    # -------- per-object argmax (obj_preds) + softmax score, ONCE ----------
    lane_it = jax.lax.broadcasted_iota(jnp.int32, (N, P), 1)
    valid_cls = lane_it < C
    md = jnp.where(valid_cls & (lane_it >= 1), obj_dists, NEG)
    mx = jnp.max(md, axis=-1, keepdims=True)
    cand = jnp.where(md == mx, lane_it.astype(f32), float(P))
    obj_pred_f = jnp.min(cand, axis=-1, keepdims=True)      # first max idx [N,1]
    obj_pred_i = obj_pred_f.astype(jnp.int32)

    dmask = jnp.where(valid_cls, obj_dists, NEG)
    m2 = jnp.max(dmask, axis=-1, keepdims=True)
    ex2 = jnp.exp(dmask - m2)
    p2 = ex2 * pl.reciprocal(jnp.sum(ex2, axis=-1, keepdims=True), approx=True)
    obj_score = jnp.sum(jnp.where(lane_it == obj_pred_i, p2, 0.0),
                        axis=-1, keepdims=True)              # [N,1]
    objm_ref[...] = jnp.where(lane_it == 0, obj_pred_f,
                              jnp.where(lane_it == 1, obj_score, 0.0))

    # ---------------- global logits ----------------
    gfeat = gfeat_ref[...]
    gld_ref[...] = (jnp.dot(gfeat.astype(bf16), glw_ref[...],
                            preferred_element_type=f32) + glb_ref[...])

    # ------- multi-hot + per-object global feature gather (one-hot matmuls) -
    cls_oh = (lbl_ref[...] == lane_it).astype(f32)                         # [N,P]
    im_oh = (imcol_ref[...] ==
             jax.lax.broadcasted_iota(jnp.int32, (N, IPAD), 1)).astype(f32)   # [N,I]
    im_oh_t = (imrow_ref[...] ==
               jax.lax.broadcasted_iota(jnp.int32, (IPAD, N), 0)).astype(f32)  # [I,N]
    gf_re = jnp.dot(im_oh, gfeat, preferred_element_type=f32)              # [N,P]
    mh_ref[...] = jnp.minimum(
        jnp.dot(im_oh_t, cls_oh, preferred_element_type=f32), 1.0)

    # ---------------- additive global attention ----------------
    s_in = node + gf_re
    att = (jnp.dot(s_in.astype(bf16), addw_ref[...], preferred_element_type=f32)
           + addb_ref[...])
    s_att = jnp.maximum(att[:, 0:1], 0.0)
    o_att = jnp.maximum(jax.nn.sigmoid(att[:, 1:2]), 0.0)  # ReLU(sigmoid) as in ref
    subj_rep = node + s_att * gf_re
    obj_rep = node + o_att * gf_re

    # --------- per-relation gathers via one-hot matmuls (in-kernel) --------
    rel_idx = rel_ref[...]
    subj_idx = rel_idx[:, 1:2]; obj_idx = rel_idx[:, 2:3]          # [R,1] i32
    n_iota = jax.lax.broadcasted_iota(jnp.int32, (R, N), 1)
    s_oh = (subj_idx == n_iota).astype(f32)                        # [R,N]
    o_oh = (obj_idx == n_iota).astype(f32)
    subj_g = jnp.dot(s_oh.astype(bf16), subj_rep.astype(bf16),
                     preferred_element_type=f32)                   # [R,P]
    obj_g = jnp.dot(o_oh.astype(bf16), obj_rep.astype(bf16),
                    preferred_element_type=f32)
    # geometry slab: boxes in lanes 0..3, per-object pred in lane 4 — gathered
    # boxes AND preds with one matmul (f32 for exact coordinates / indices)
    obj_geom = jnp.where(lane_it == 4, obj_pred_f, boxes)
    sg = jnp.dot(s_oh, obj_geom, preferred_element_type=f32)
    og = jnp.dot(o_oh, obj_geom, preferred_element_type=f32)

    # edge coordinate features (coordinate_feats), divides -> EUP reciprocals
    sx1 = sg[:, 0:1]; sy1 = sg[:, 1:2]; sx2 = sg[:, 2:3]; sy2 = sg[:, 3:4]
    sw = sx2 - sx1 + 1.0; sh = sy2 - sy1 + 1.0
    ox1 = og[:, 0:1]; oy1 = og[:, 1:2]; ox2 = og[:, 2:3]; oy2 = og[:, 3:4]
    ocx = (ox1 + ox2) * 0.5; ocy = (oy1 + oy2) * 0.5
    inv_ocw = pl.reciprocal(ox2 - ox1 + 1.0, approx=True)
    inv_och = pl.reciprocal(oy2 - oy1 + 1.0, approx=True)
    e0 = (sx1 - ocx) * inv_ocw
    e1 = (sy1 - ocy) * inv_och
    e2c = (sx2 - ocx) * inv_ocw
    e3 = (sy2 - ocy) * inv_och
    e4 = sw * sh * inv_ocw * inv_och
    # edge_coordinate_embedding (BN-folded linear over 5 coord features)
    e_emb = (e0 * cw_ref[0:1, :] + e1 * cw_ref[1:2, :] + e2c * cw_ref[2:3, :]
             + e3 * cw_ref[3:4, :] + e4 * cw_ref[4:5, :] + cb_ref[...])
    e_emb = jnp.maximum(e_emb, 0.0)

    # relation logits: tanh(cat(prod, e_ij)) @ W_rel + b (concat split exactly)
    prod = subj_g * obj_g * union_ref[...].astype(f32)
    rel_lin = (jnp.dot(jnp.tanh(prod).astype(bf16), rwp_ref[...],
                       preferred_element_type=f32)
               + jnp.dot(jnp.tanh(e_emb).astype(bf16), rwe_ref[...],
                         preferred_element_type=f32)
               + rb_ref[...])

    # frequency bias: gathered per-object preds (lane 4), pair index in int32.
    ps = sg[:, 4:5].astype(jnp.int32)
    po = og[:, 4:5].astype(jnp.int32)
    pair_idx = ps * C + po                                          # [R,1] i32
    cc_iota = jax.lax.broadcasted_iota(jnp.int32, (R, C * C), 1)
    pair_oh = (pair_idx == cc_iota).astype(f32)                     # [R, C*C]
    # TODO(synk): at production C=151 keep freq_bias in HBM and DMA-gather the
    #             R rows (scalar-prefetched pair_idx) instead of this one-hot.
    freq = jnp.dot(pair_oh, freq_ref[...], preferred_element_type=f32)

    rel_dists = rel_lin + freq
    reld_ref[...] = rel_dists

    # fused epilogue: rel_rep = softmax over the real NUM_RELS columns
    rel_it = jax.lax.broadcasted_iota(jnp.int32, (R, P), 1)
    rmask = jnp.where(rel_it < NUM_RELS, rel_dists, NEG)
    rm = jnp.max(rmask, axis=-1, keepdims=True)
    rex = jnp.exp(rmask - rm)
    relp_ref[...] = rex * pl.reciprocal(jnp.sum(rex, axis=-1, keepdims=True),
                                        approx=True)


# =============================== param prep =================================

def fold_bn_linear(bn, W, b, eps=1e-5):
    """Fold eval-mode BatchNorm1d (x-m)/sqrt(v+eps)*g + beta into Linear(W, b)."""
    s = bn['gamma'] / jnp.sqrt(bn['var'] + eps)
    W_f = W * s[:, None]
    b_f = b + (bn['beta'] - bn['mean'] * s) @ W
    return W_f, b_f


def _pad2(x, rows, cols, val=0.0):
    return jnp.pad(x, ((0, rows - x.shape[0]), (0, cols - x.shape[1])),
                   constant_values=val)


def _row(x, cols):
    return _pad2(x[None, :], 1, cols)


def prepare_params(p):
    """Hoisted once per model: BN folding, concat-splits, lane padding, bf16."""
    bf16 = jnp.bfloat16
    pw, pb = fold_bn_linear(p['pos_bn'], p['pos_w'], p['pos_b'])
    fw, fb = fold_bn_linear(p['fus_bn'], p['fus_w'], p['fus_b'])
    cw, cb = fold_bn_linear(p['edge_bn'], p['edge_w'], p['edge_b'])
    fwe, fwp = fw[:EMBED_DIM], fw[EMBED_DIM:]        # split concat -> 2 matmuls
    rwp, rwe = p['rel_w'][:FUSE_DIM], p['rel_w'][FUSE_DIM:]
    addw = jnp.stack([p['sub_add_w'], p['obj_add_w']], axis=1)     # [FUSE, 2]
    addb = jnp.concatenate([p['sub_add_b'], p['obj_add_b']])       # [2]
    return (
        _pad2(p['obj_embed_w'], LANE, LANE).astype(bf16),          # embw
        _pad2(pw, 8, LANE),                                        # pw  (VPU, f32)
        _row(pb, LANE),                                            # pb
        _pad2(fwe, LANE, LANE).astype(bf16),                       # fwe
        _pad2(fwp, LANE, LANE).astype(bf16),                       # fwp
        _row(fb, LANE),                                            # fb
        _pad2(p['dec_w'], LANE, LANE).astype(bf16),                # dw
        _row(p['dec_b'], LANE),                                    # db
        _pad2(p['gl_w'], LANE, LANE).astype(bf16),                 # glw
        _row(p['gl_b'], LANE),                                     # glb
        _pad2(addw, LANE, LANE).astype(bf16),                      # addw
        _row(addb, LANE),                                          # addb
        _pad2(cw, 8, LANE),                                        # cw  (VPU, f32)
        _row(cb, LANE),                                            # cb
        _pad2(rwp, LANE, LANE).astype(bf16),                       # rwp
        _pad2(rwe, LANE, LANE).astype(bf16),                       # rwe
        _row(p['rel_b'], LANE),                                    # rb
        _pad2(p['freq_bias'], NUM_CLASSES * NUM_CLASSES, LANE),    # freq (f32)
    )


def init_params(key):
    ks = jax.random.split(key, 20)
    nrm = lambda k, shape, s: (jax.random.normal(k, shape, jnp.float32) * s)
    bn = lambda d: dict(gamma=jnp.ones((d,), jnp.float32), beta=jnp.zeros((d,), jnp.float32),
                        mean=jnp.zeros((d,), jnp.float32), var=jnp.ones((d,), jnp.float32))
    xav = lambda fi, fo: float(np.sqrt(2.0 / (fi + fo)))
    p = {}
    p['obj_embed_w'] = nrm(ks[0], (NUM_CLASSES, EMBED_DIM), 0.1)
    p['pos_bn'] = bn(4)
    p['pos_w'] = nrm(ks[1], (4, POS_DIM), 0.1); p['pos_b'] = jnp.zeros((POS_DIM,), jnp.float32)
    p['fus_bn'] = bn(EMBED_DIM + POS_DIM)
    p['fus_w'] = nrm(ks[2], (EMBED_DIM + POS_DIM, FUSE_DIM), 0.05)
    p['fus_b'] = jnp.zeros((FUSE_DIM,), jnp.float32)
    p['dec_w'] = nrm(ks[3], (FUSE_DIM, NUM_CLASSES), 0.05)
    p['dec_b'] = jnp.zeros((NUM_CLASSES,), jnp.float32)
    p['gl_w'] = nrm(ks[4], (FUSE_DIM, NUM_CLASSES), xav(FUSE_DIM, NUM_CLASSES))
    p['gl_b'] = jnp.zeros((NUM_CLASSES,), jnp.float32)
    p['sub_add_w'] = nrm(ks[5], (FUSE_DIM,), 0.05); p['sub_add_b'] = jnp.zeros((1,), jnp.float32)
    p['obj_add_w'] = nrm(ks[6], (FUSE_DIM,), 0.05); p['obj_add_b'] = jnp.zeros((1,), jnp.float32)
    p['edge_bn'] = bn(5)
    p['edge_w'] = nrm(ks[7], (5, EDGE_COORD_DIM), 0.1)
    p['edge_b'] = jnp.zeros((EDGE_COORD_DIM,), jnp.float32)
    p['rel_w'] = nrm(ks[8], (FUSE_DIM + EDGE_COORD_DIM, NUM_RELS),
                     xav(FUSE_DIM + EDGE_COORD_DIM, NUM_RELS))
    p['rel_b'] = jnp.zeros((NUM_RELS,), jnp.float32)
    p['freq_bias'] = nrm(ks[9], (NUM_CLASSES * NUM_CLASSES, NUM_RELS), 0.05)
    return p


def build_rel_inds(im_inds):
    """Eval-mode get_rel_inds for sgcls: all same-image, non-diagonal pairs."""
    pairs = []
    n = len(im_inds)
    for i in range(n):
        for j in range(n):
            if i != j and im_inds[i] == im_inds[j]:
                pairs.append((int(im_inds[i]), i, j))
    return np.asarray(pairs, dtype=np.int32)


# =============================== forward ====================================

def _ceil_to(x, m):
    return -(-x // m) * m


@jax.jit
def rel_model_forward(weights, obj_logits, boxes, im_inds, obj_labels,
                      global_feature, union_rep, rel_inds):
    """Eval-mode RelModel forward, mode='sgcls', fused into one pallas_call."""
    N, C = obj_logits.shape
    I = global_feature.shape[0]
    R = rel_inds.shape[0]
    NPAD = _ceil_to(N, 8)
    IPAD = max(8, _ceil_to(I, 8))
    RPAD = _ceil_to(R, 16)        # 16: keeps the bf16 union slab tile-aligned

    # lane-dense padded inputs; padded object rows use im=-1 (never selected)
    logits_p = jnp.full((NPAD, LANE), NEG, jnp.float32).at[:N, :C].set(obj_logits)
    boxes_p = jnp.zeros((NPAD, LANE), jnp.float32).at[:N, :boxes.shape[1]].set(boxes)
    im_col = jnp.full((NPAD, 1), -1, jnp.int32).at[:N, 0].set(im_inds.astype(jnp.int32))
    im_row = jnp.full((1, NPAD), -1, jnp.int32).at[0, :N].set(im_inds.astype(jnp.int32))
    lbl_col = jnp.zeros((NPAD, 1), jnp.int32).at[:N, 0].set(obj_labels.astype(jnp.int32))
    rel_p = jnp.zeros((RPAD, 3), jnp.int32).at[:R].set(rel_inds.astype(jnp.int32))
    gfeat_p = (jnp.zeros((IPAD, LANE), jnp.float32)
               .at[:I, :global_feature.shape[1]].set(global_feature))
    union_p = (jnp.zeros((RPAD, LANE), jnp.bfloat16)
               .at[:R, :union_rep.shape[1]].set(union_rep.astype(jnp.bfloat16)))

    data = (logits_p, boxes_p, im_col, im_row, lbl_col, rel_p, gfeat_p, union_p)
    args = data + weights

    out_shapes = (
        jax.ShapeDtypeStruct((NPAD, LANE), jnp.float32),   # obj_dists   (padded)
        jax.ShapeDtypeStruct((NPAD, LANE), jnp.float32),   # packed pred/score
        jax.ShapeDtypeStruct((IPAD, LANE), jnp.float32),   # global_dists(padded)
        jax.ShapeDtypeStruct((IPAD, LANE), jnp.float32),   # multi_hot   (padded)
        jax.ShapeDtypeStruct((RPAD, LANE), jnp.float32),   # rel_dists   (padded)
        jax.ShapeDtypeStruct((RPAD, LANE), jnp.float32),   # rel_rep     (padded)
    )
    vspec = lambda: pl.BlockSpec(memory_space=pltpu.MemorySpace.VMEM)
    objd_p, objm_p, gld_p, mh_p, reld_p, relp_p = pl.pallas_call(
        fused_forward_kernel,
        out_shape=out_shapes,
        in_specs=[vspec() for _ in args],
        out_specs=tuple(vspec() for _ in out_shapes),
    )(*args)

    obj_dists = objd_p[:N, :C]
    obj_preds = objm_p[:N, 0].astype(jnp.int32)
    obj_scores = objm_p[:N, 1]
    global_dists = gld_p[:I, :C]
    multi_hot = mh_p[:I, :C]
    rel_dists = reld_p[:R, :NUM_RELS]
    rel_rep = relp_p[:R, :NUM_RELS]

    return dict(global_dists=global_dists, rm_obj_dists=obj_dists,
                obj_preds=obj_preds, multi_hot=multi_hot,
                rel_dists=rel_dists, obj_scores=obj_scores, rel_rep=rel_rep,
                bboxes=boxes, rel_pairs=rel_inds[:, 1:])


# =============================== main =======================================

if __name__ == "__main__":
    key = jax.random.PRNGKey(0)
    k = jax.random.split(key, 8)

    raw_params = init_params(k[0])
    weights = prepare_params(raw_params)     # hoisted: BN-fold + split + pad + bf16

    im_inds_np = np.array([0, 0, 0, 0, 1, 1, 1, 1], dtype=np.int32)
    rel_inds_np = build_rel_inds(im_inds_np)              # [R, 3] (im, subj, obj)
    R = rel_inds_np.shape[0]

    obj_logits = jax.random.normal(k[1], (N_OBJ, NUM_CLASSES), jnp.float32)
    x1y1 = jax.random.uniform(k[2], (N_OBJ, 2), minval=0.0, maxval=50.0)
    wh = jax.random.uniform(k[3], (N_OBJ, 2), minval=5.0, maxval=40.0)
    boxes = jnp.concatenate([x1y1, x1y1 + wh], axis=1).astype(jnp.float32)
    obj_labels = jax.random.randint(k[4], (N_OBJ,), 1, NUM_CLASSES).astype(jnp.int32)
    # TODO(synk): stand-ins for EmbeddingImagenet(fmap) and visual_rep(union boxes)
    global_feature = jax.random.normal(k[5], (N_IMG, FUSE_DIM), jnp.float32)
    union_rep = jax.random.normal(k[6], (R, FUSE_DIM), jnp.float32)

    out = rel_model_forward(weights, obj_logits, boxes,
                            jnp.asarray(im_inds_np), obj_labels,
                            global_feature, union_rep,
                            jnp.asarray(rel_inds_np))
    jax.block_until_ready(out)

    assert out['rm_obj_dists'].shape == (N_OBJ, NUM_CLASSES)
    assert out['rel_dists'].shape == (R, NUM_RELS)
    assert out['rel_rep'].shape == (R, NUM_RELS)
    assert out['global_dists'].shape == (N_IMG, NUM_CLASSES)
    assert out['multi_hot'].shape == (N_IMG, NUM_CLASSES)
    assert out['obj_preds'].shape == (N_OBJ,)
    assert out['obj_scores'].shape == (N_OBJ,)
    print("KERNEL_OK")
</pallas_src>

<mosaic_0001>
module attributes {stable_mosaic.version = 11 : i64} {
  func.func @fused_forward_kernel(%arg0: memref<8x128xf32, #tpu.memory_space<vmem>>, %arg1: memref<8x128xf32, #tpu.memory_space<vmem>>, %arg2: memref<8x1xi32, #tpu.memory_space<vmem>>, %arg3: memref<1x8xi32, #tpu.memory_space<vmem>>, %arg4: memref<8x1xi32, #tpu.memory_space<vmem>>, %arg5: memref<32x3xi32, #tpu.memory_space<vmem>>, %arg6: memref<8x128xf32, #tpu.memory_space<vmem>>, %arg7: memref<32x128xbf16, #tpu.memory_space<vmem>>, %arg8: memref<128x128xbf16, #tpu.memory_space<vmem>>, %arg9: memref<8x128xf32, #tpu.memory_space<vmem>>, %arg10: memref<1x128xf32, #tpu.memory_space<vmem>>, %arg11: memref<128x128xbf16, #tpu.memory_space<vmem>>, %arg12: memref<128x128xbf16, #tpu.memory_space<vmem>>, %arg13: memref<1x128xf32, #tpu.memory_space<vmem>>, %arg14: memref<128x128xbf16, #tpu.memory_space<vmem>>, %arg15: memref<1x128xf32, #tpu.memory_space<vmem>>, %arg16: memref<128x128xbf16, #tpu.memory_space<vmem>>, %arg17: memref<1x128xf32, #tpu.memory_space<vmem>>, %arg18: memref<128x128xbf16, #tpu.memory_space<vmem>>, %arg19: memref<1x128xf32, #tpu.memory_space<vmem>>, %arg20: memref<8x128xf32, #tpu.memory_space<vmem>>, %arg21: memref<1x128xf32, #tpu.memory_space<vmem>>, %arg22: memref<128x128xbf16, #tpu.memory_space<vmem>>, %arg23: memref<128x128xbf16, #tpu.memory_space<vmem>>, %arg24: memref<1x128xf32, #tpu.memory_space<vmem>>, %arg25: memref<256x128xf32, #tpu.memory_space<vmem>>, %arg26: memref<8x128xf32, #tpu.memory_space<vmem>>, %arg27: memref<8x128xf32, #tpu.memory_space<vmem>>, %arg28: memref<8x128xf32, #tpu.memory_space<vmem>>, %arg29: memref<8x128xf32, #tpu.memory_space<vmem>>, %arg30: memref<32x128xf32, #tpu.memory_space<vmem>>, %arg31: memref<32x128xf32, #tpu.memory_space<vmem>>) attributes {dimension_semantics = [], scalar_prefetch = 0 : i64, scratch_operands = 0 : i64, tpu.core_type = #tpu.core_type<tc>} {
    %c0 = arith.constant 0 : index
    %c0_0 = arith.constant 0 : index
    %0 = vector.load %arg0[%c0, %c0_0] : memref<8x128xf32, #tpu.memory_space<vmem>>, vector<8x128xf32>
    %cst = arith.constant dense<0xFF800000> : vector<8xf32>
    %1 = vector.multi_reduction <maximumf>, %0, %cst [1] : vector<8x128xf32> to vector<8xf32>
    %2 = vector.shape_cast %1 : vector<8xf32> to vector<8x1xf32>
    %3 = vector.broadcast %2 : vector<8x1xf32> to vector<8x128xf32>
    %4 = arith.subf %0, %3 : vector<8x128xf32>
    %5 = math.exp %4 : vector<8x128xf32>
    %cst_1 = arith.constant dense<0.000000e+00> : vector<8xf32>
    %6 = vector.multi_reduction <add>, %5, %cst_1 [1] : vector<8x128xf32> to vector<8xf32>
    %7 = vector.shape_cast %6 : vector<8xf32> to vector<8x1xf32>
    %8 = tpu.reciprocal %7 {approx = true} : vector<8x1xf32> -> vector<8x1xf32>
    %9 = vector.broadcast %8 : vector<8x1xf32> to vector<8x128xf32>
    %10 = arith.mulf %5, %9 : vector<8x128xf32>
    %11 = arith.truncf %10 : vector<8x128xf32> to vector<8x128xbf16>
    %c0_2 = arith.constant 0 : index
    %c0_3 = arith.constant 0 : index
    %12 = vector.load %arg8[%c0_2, %c0_3] : memref<128x128xbf16, #tpu.memory_space<vmem>>, vector<128x128xbf16>
    %cst_4 = arith.constant dense<0.000000e+00> : vector<8x128xf32>
    %13 = tpu.matmul %11, %12, %cst_4 {dimension_numbers = #tpu.dot_dimension_numbers<[1], [0], [0], [1], [0, 0, 1, 1], [], []>} : vector<8x128xbf16>, vector<128x128xbf16>, vector<8x128xf32> -> vector<8x128xf32>
    %c0_5 = arith.constant 0 : index
    %c0_6 = arith.constant 0 : index
    %14 = vector.load %arg1[%c0_5, %c0_6] : memref<8x128xf32, #tpu.memory_space<vmem>>, vector<8x128xf32>
    %15 = vector.extract_strided_slice %14 {offsets = [0, 0], sizes = [8, 1], strides = [1, 1]} : vector<8x128xf32> to vector<8x1xf32>
    %16 = vector.extract_strided_slice %14 {offsets = [0, 1], sizes = [8, 1], strides = [1, 1]} : vector<8x128xf32> to vector<8x1xf32>
    %17 = vector.extract_strided_slice %14 {offsets = [0, 2], sizes = [8, 1], strides = [1, 1]} : vector<8x128xf32> to vector<8x1xf32>
    %18 = vector.extract_strided_slice %14 {offsets = [0, 3], sizes = [8, 1], strides = [1, 1]} : vector<8x128xf32> to vector<8x1xf32>
    %19 = arith.subf %17, %15 : vector<8x1xf32>
    %cst_7 = arith.constant 1.000000e+00 : f32
    %20 = vector.broadcast %cst_7 : f32 to vector<8x1xf32>
    %21 = arith.addf %19, %20 : vector<8x1xf32>
    %22 = arith.subf %18, %16 : vector<8x1xf32>
    %cst_8 = arith.constant 1.000000e+00 : f32
    %23 = vector.broadcast %cst_8 : f32 to vector<8x1xf32>
    %24 = arith.addf %22, %23 : vector<8x1xf32>
    %25 = arith.addf %15, %17 : vector<8x1xf32>
    %cst_9 = arith.constant 5.000000e-01 : f32
    %26 = vector.broadcast %cst_9 : f32 to vector<8x1xf32>
    %27 = arith.mulf %25, %26 : vector<8x1xf32>
    %28 = arith.addf %16, %18 : vector<8x1xf32>
    %cst_10 = arith.constant 5.000000e-01 : f32
    %29 = vector.broadcast %cst_10 : f32 to vector<8x1xf32>
    %30 = arith.mulf %28, %29 : vector<8x1xf32>
    %c0_11 = arith.constant 0 : index
    %c0_12 = arith.constant 0 : index
    %31 = vector.load %arg9[%c0_11, %c0_12] : memref<8x128xf32, #tpu.memory_space<vmem>>, vector<1x128xf32>
    %32 = vector.broadcast %27 : vector<8x1xf32> to vector<8x128xf32>
    %33 = vector.broadcast %31 : vector<1x128xf32> to vector<8x128xf32>
    %34 = arith.mulf %32, %33 : vector<8x128xf32>
    %c1 = arith.constant 1 : index
    %c0_13 = arith.constant 0 : index
    %35 = vector.load %arg9[%c1, %c0_13] : memref<8x128xf32, #tpu.memory_space<vmem>>, vector<1x128xf32>
    %36 = vector.broadcast %30 : vector<8x1xf32> to vector<8x128xf32>
    %37 = vector.broadcast %35 : vector<1x128xf32> to vector<8x128xf32>
    %38 = arith.mulf %36, %37 : vector<8x128xf32>
    %39 = arith.addf %34, %38 : vector<8x128xf32>
    %c2 = arith.constant 2 : index
    %c0_14 = arith.constant 0 : index
    %40 = vector.load %arg9[%c2, %c0_14] : memref<8x128xf32, #tpu.memory_space<vmem>>, vector<1x128xf32>
    %41 = vector.broadcast %21 : vector<8x1xf32> to vector<8x128xf32>
    %42 = vector.broadcast %40 : vector<1x128xf32> to vector<8x128xf32>
    %43 = arith.mulf %41, %42 : vector<8x128xf32>
    %44 = arith.addf %39, %43 : vector<8x128xf32>
    %c3 = arith.constant 3 : index
    %c0_15 = arith.constant 0 : index
    %45 = vector.load %arg9[%c3, %c0_15] : memref<8x128xf32, #tpu.memory_space<vmem>>, vector<1x128xf32>
    %46 = vector.broadcast %24 : vector<8x1xf32> to vector<8x128xf32>
    %47 = vector.broadcast %45 : vector<1x128xf32> to vector<8x128xf32>
    %48 = arith.mulf %46, %47 : vector<8x128xf32>
    %49 = arith.addf %44, %48 : vector<8x128xf32>
    %c0_16 = arith.constant 0 : index
    %c0_17 = arith.constant 0 : index
    %50 = vector.load %arg10[%c0_16, %c0_17] : memref<1x128xf32, #tpu.memory_space<vmem>>, vector<1x128xf32>
    %51 = vector.broadcast %50 : vector<1x128xf32> to vector<8x128xf32>
    %52 = arith.addf %49, %51 : vector<8x128xf32>
    %cst_18 = arith.constant 0.000000e+00 : f32
    %53 = vector.broadcast %cst_18 : f32 to vector<8x128xf32>
    %54 = arith.maximumf %52, %53 : vector<8x128xf32>
    %55 = arith.truncf %13 : vector<8x128xf32> to vector<8x128xbf16>
    %c0_19 = arith.constant 0 : index
    %c0_20 = arith.constant 0 : index
    %56 = vector.load %arg11[%c0_19, %c0_20] : memref<128x128xbf16, #tpu.memory_space<vmem>>, vector<128x128xbf16>
    %cst_21 = arith.constant dense<0.000000e+00> : vector<8x128xf32>
    %57 = tpu.matmul %55, %56, %cst_21 {dimension_numbers = #tpu.dot_dimension_numbers<[1], [0], [0], [1], [0, 0, 1, 1], [], []>} : vector<8x128xbf16>, vector<128x128xbf16>, vector<8x128xf32> -> vector<8x128xf32>
    %58 = arith.truncf %54 : vector<8x128xf32> to vector<8x128xbf16>
    %c0_22 = arith.constant 0 : index
    %c0_23 = arith.constant 0 : index
    %59 = vector.load %arg12[%c0_22, %c0_23] : memref<128x128xbf16, #tpu.memory_space<vmem>>, vector<128x128xbf16>
    %cst_24 = arith.constant dense<0.000000e+00> : vector<8x128xf32>
    %60 = tpu.matmul %58, %59, %cst_24 {dimension_numbers = #tpu.dot_dimension_numbers<[1], [0], [0], [1], [0, 0, 1, 1], [], []>} : vector<8x128xbf16>, vector<128x128xbf16>, vector<8x128xf32> -> vector<8x128xf32>
    %61 = arith.addf %57, %60 : vector<8x128xf32>
    %c0_25 = arith.constant 0 : index
    %c0_26 = arith.constant 0 : index
    %62 = vector.load %arg13[%c0_25, %c0_26] : memref<1x128xf32, #tpu.memory_space<vmem>>, vector<1x128xf32>
    %63 = vector.broadcast %62 : vector<1x128xf32> to vector<8x128xf32>
    %64 = arith.addf %61, %63 : vector<8x128xf32>
    %cst_27 = arith.constant 0.000000e+00 : f32
    %65 = vector.broadcast %cst_27 : f32 to vector<8x128xf32>
    %66 = arith.maximumf %64, %65 : vector<8x128xf32>
    %67 = arith.truncf %66 : vector<8x128xf32> to vector<8x128xbf16>
    %c0_28 = arith.constant 0 : index
    %c0_29 = arith.constant 0 : index
    %68 = vector.load %arg14[%c0_28, %c0_29] : memref<128x128xbf16, #tpu.memory_space<vmem>>, vector<128x128xbf16>
    %cst_30 = arith.constant dense<0.000000e+00> : vector<8x128xf32>
    %69 = tpu.matmul %67, %68, %cst_30 {dimension_numbers = #tpu.dot_dimension_numbers<[1], [0], [0], [1], [0, 0, 1, 1], [], []>} : vector<8x128xbf16>, vector<128x128xbf16>, vector<8x128xf32> -> vector<8x128xf32>
    %c0_31 = arith.constant 0 : index
    %c0_32 = arith.constant 0 : index
    %70 = vector.load %arg15[%c0_31, %c0_32] : memref<1x128xf32, #tpu.memory_space<vmem>>, vector<1x128xf32>
    %71 = vector.broadcast %70 : vector<1x128xf32> to vector<8x128xf32>
    %72 = arith.addf %69, %71 : vector<8x128xf32>
    %c0_33 = arith.constant 0 : index
    %c0_34 = arith.constant 0 : index
    %73 = vector.load %arg26[%c0_33, %c0_34] : memref<8x128xf32, #tpu.memory_space<vmem>>, vector<8x128xf32>
    tpu.vector_store %arg26[%c0_33, %c0_34], %72 {strides = array<i32>} : memref<8x128xf32, #tpu.memory_space<vmem>>, vector<8x128xf32>,
    %74 = tpu.iota {dimensions = array<i32: 1>} : vector<8x128xi32>
    %c16_i32 = arith.constant 16 : i32
    %75 = vector.broadcast %c16_i32 : i32 to vector<8x128xi32>
    %76 = arith.cmpi slt, %74, %75 : vector<8x128xi32>
    %c1_i32 = arith.constant 1 : i32
    %77 = vector.broadcast %c1_i32 : i32 to vector<8x128xi32>
    %78 = arith.cmpi sge, %74, %77 : vector<8x128xi32>
    %79 = arith.andi %76, %78 : vector<8x128xi1>
    %cst_35 = arith.constant -1.000000e+30 : f32
    %80 = vector.broadcast %cst_35 : f32 to vector<8x128xf32>
    %81 = arith.select %79, %72, %80 : vector<8x128xi1>, vector<8x128xf32>
    %cst_36 = arith.constant dense<0xFF800000> : vector<8xf32>
    %82 = vector.multi_reduction <maximumf>, %81, %cst_36 [1] : vector<8x128xf32> to vector<8xf32>
    %83 = vector.shape_cast %82 : vector<8xf32> to vector<8x1xf32>
    %84 = vector.broadcast %83 : vector<8x1xf32> to vector<8x128xf32>
    %85 = arith.cmpf oeq, %81, %84 : vector<8x128xf32>
    %86 = arith.sitofp %74 : vector<8x128xi32> to vector<8x128xf32>
    %cst_37 = arith.constant 1.280000e+02 : f32
    %87 = vector.broadcast %cst_37 : f32 to vector<8x128xf32>
    %88 = arith.select %85, %86, %87 : vector<8x128xi1>, vector<8x128xf32>
    %cst_38 = arith.constant dense<0x7F800000> : vector<8xf32>
    %89 = vector.multi_reduction <minimumf>, %88, %cst_38 [1] : vector<8x128xf32> to vector<8xf32>
    %90 = vector.shape_cast %89 : vector<8xf32> to vector<8x1xf32>
    %91 = arith.fptosi %90 : vector<8x1xf32> to vector<8x1xi32>
    %cst_39 = arith.constant -1.000000e+30 : f32
    %92 = vector.broadcast %cst_39 : f32 to vector<8x128xf32>
    %93 = arith.select %76, %72, %92 : vector<8x128xi1>, vector<8x128xf32>
    %cst_40 = arith.constant dense<0xFF800000> : vector<8xf32>
    %94 = vector.multi_reduction <maximumf>, %93, %cst_40 [1] : vector<8x128xf32> to vector<8xf32>
    %95 = vector.shape_cast %94 : vector<8xf32> to vector<8x1xf32>
    %96 = vector.broadcast %95 : vector<8x1xf32> to vector<8x128xf32>
    %97 = arith.subf %93, %96 : vector<8x128xf32>
    %98 = math.exp %97 : vector<8x128xf32>
    %cst_41 = arith.constant dense<0.000000e+00> : vector<8xf32>
    %99 = vector.multi_reduction <add>, %98, %cst_41 [1] : vector<8x128xf32> to vector<8xf32>
    %100 = vector.shape_cast %99 : vector<8xf32> to vector<8x1xf32>
    %101 = tpu.reciprocal %100 {approx = true} : vector<8x1xf32> -> vector<8x1xf32>
    %102 = vector.broadcast %101 : vector<8x1xf32> to vector<8x128xf32>
    %103 = arith.mulf %98, %102 : vector<8x128xf32>
    %104 = vector.broadcast %91 : vector<8x1xi32> to vector<8x128xi32>
    %105 = arith.cmpi eq, %74, %104 : vector<8x128xi32>
    %cst_42 = arith.constant 0.000000e+00 : f32
    %106 = vector.broadcast %cst_42 : f32 to vector<8x128xf32>
    %107 = arith.select %105, %103, %106 : vector<8x128xi1>, vector<8x128xf32>
    %cst_43 = arith.constant dense<0.000000e+00> : vector<8xf32>
    %108 = vector.multi_reduction <add>, %107, %cst_43 [1] : vector<8x128xf32> to vector<8xf32>
    %109 = vector.shape_cast %108 : vector<8xf32> to vector<8x1xf32>
    %c0_i32 = arith.constant 0 : i32
    %110 = vector.broadcast %c0_i32 : i32 to vector<8x128xi32>
    %111 = arith.cmpi eq, %74, %110 : vector<8x128xi32>
    %c1_i32_44 = arith.constant 1 : i32
    %112 = vector.broadcast %c1_i32_44 : i32 to vector<8x128xi32>
    %113 = arith.cmpi eq, %74, %112 : vector<8x128xi32>
    %cst_45 = arith.constant 0.000000e+00 : f32
    %114 = vector.shape_cast %109 : vector<8x1xf32> to vector<8x1xf32>
    %115 = vector.broadcast %114 : vector<8x1xf32> to vector<8x128xf32>
    %116 = vector.broadcast %cst_45 : f32 to vector<8x128xf32>
    %117 = arith.select %113, %115, %116 : vector<8x128xi1>, vector<8x128xf32>
    %118 = vector.shape_cast %90 : vector<8x1xf32> to vector<8x1xf32>
    %119 = vector.broadcast %118 : vector<8x1xf32> to vector<8x128xf32>
    %120 = arith.select %111, %119, %117 : vector<8x128xi1>, vector<8x128xf32>
    %c0_46 = arith.constant 0 : index
    %c0_47 = arith.constant 0 : index
    %121 = vector.load %arg27[%c0_46, %c0_47] : memref<8x128xf32, #tpu.memory_space<vmem>>, vector<8x128xf32>
    tpu.vector_store %arg27[%c0_46, %c0_47], %120 {strides = array<i32>} : memref<8x128xf32, #tpu.memory_space<vmem>>, vector<8x128xf32>,
    %c0_48 = arith.constant 0 : index
    %c0_49 = arith.constant 0 : index
    %122 = vector.load %arg6[%c0_48, %c0_49] : memref<8x128xf32, #tpu.memory_space<vmem>>, vector<8x128xf32>
    %123 = arith.truncf %122 : vector<8x128xf32> to vector<8x128xbf16>
    %c0_50 = arith.constant 0 : index
    %c0_51 = arith.constant 0 : index
    %124 = vector.load %arg16[%c0_50, %c0_51] : memref<128x128xbf16, #tpu.memory_space<vmem>>, vector<128x128xbf16>
    %cst_52 = arith.constant dense<0.000000e+00> : vector<8x128xf32>
    %125 = tpu.matmul %123, %124, %cst_52 {dimension_numbers = #tpu.dot_dimension_numbers<[1], [0], [0], [1], [0, 0, 1, 1], [], []>} : vector<8x128xbf16>, vector<128x128xbf16>, vector<8x128xf32> -> vector<8x128xf32>
    %c0_53 = arith.constant 0 : index
    %c0_54 = arith.constant 0 : index
    %126 = vector.load %arg17[%c0_53, %c0_54] : memref<1x128xf32, #tpu.memory_space<vmem>>, vector<1x128xf32>
    %127 = vector.broadcast %126 : vector<1x128xf32> to vector<8x128xf32>
    %128 = arith.addf %125, %127 : vector<8x128xf32>
    %c0_55 = arith.constant 0 : index
    %c0_56 = arith.constant 0 : index
    %129 = vector.load %arg28[%c0_55, %c0_56] : memref<8x128xf32, #tpu.memory_space<vmem>>, vector<8x128xf32>
    tpu.vector_store %arg28[%c0_55, %c0_56], %128 {strides = array<i32>} : memref<8x128xf32, #tpu.memory_space<vmem>>, vector<8x128xf32>,
    %c0_57 = arith.constant 0 : index
    %c0_58 = arith.constant 0 : index
    %130 = vector.load %arg4[%c0_57, %c0_58] : memref<8x1xi32, #tpu.memory_space<vmem>>, vector<8x1xi32>
    %131 = vector.broadcast %130 : vector<8x1xi32> to vector<8x128xi32>
    %132 = arith.cmpi eq, %131, %74 : vector<8x128xi32>
    %133 = arith.extui %132 : vector<8x128xi1> to vector<8x128xi32>
    %134 = arith.sitofp %133 : vector<8x128xi32> to vector<8x128xf32>
    %c0_59 = arith.constant 0 : index
    %c0_60 = arith.constant 0 : index
    %135 = vector.load %arg2[%c0_59, %c0_60] : memref<8x1xi32, #tpu.memory_space<vmem>>, vector<8x1xi32>
    %136 = tpu.iota {dimensions = array<i32: 1>} : vector<8x8xi32>
    %137 = vector.broadcast %135 : vector<8x1xi32> to vector<8x8xi32>
    %138 = arith.cmpi eq, %137, %136 : vector<8x8xi32>
    %139 = arith.extui %138 : vector<8x8xi1> to vector<8x8xi32>
    %140 = arith.sitofp %139 : vector<8x8xi32> to vector<8x8xf32>
    %c0_61 = arith.constant 0 : index
    %c0_62 = arith.constant 0 : index
    %141 = vector.load %arg3[%c0_61, %c0_62] : memref<1x8xi32, #tpu.memory_space<vmem>>, vector<1x8xi32>
    %142 = tpu.iota {dimensions = array<i32: 0>} : vector<8x8xi32>
    %143 = vector.broadcast %141 : vector<1x8xi32> to vector<8x8xi32>
    %144 = arith.cmpi eq, %143, %142 : vector<8x8xi32>
    %145 = arith.extui %144 : vector<8x8xi1> to vector<8x8xi32>
    %146 = arith.sitofp %145 : vector<8x8xi32> to vector<8x8xf32>
    %cst_63 = arith.constant dense<0.000000e+00> : vector<8x128xf32>
    %147 = tpu.matmul %140, %122, %cst_63 {dimension_numbers = #tpu.dot_dimension_numbers<[1], [0], [0], [1], [0, 0, 1, 1], [], []>} : vector<8x8xf32>, vector<8x128xf32>, vector<8x128xf32> -> vector<8x128xf32>
    %cst_64 = arith.constant dense<0.000000e+00> : vector<8x128xf32>
    %148 = tpu.matmul %146, %134, %cst_64 {dimension_numbers = #tpu.dot_dimension_numbers<[1], [0], [0], [1], [0, 0, 1, 1], [], []>} : vector<8x8xf32>, vector<8x128xf32>, vector<8x128xf32> -> vector<8x128xf32>
    %cst_65 = arith.constant 1.000000e+00 : f32
    %149 = vector.broadcast %cst_65 : f32 to vector<8x128xf32>
    %150 = arith.minimumf %148, %149 : vector<8x128xf32>
    %c0_66 = arith.constant 0 : index
    %c0_67 = arith.constant 0 : index
    %151 = vector.load %arg29[%c0_66, %c0_67] : memref<8x128xf32, #tpu.memory_space<vmem>>, vector<8x128xf32>
    tpu.vector_store %arg29[%c0_66, %c0_67], %150 {strides = array<i32>} : memref<8x128xf32, #tpu.memory_space<vmem>>, vector<8x128xf32>,
    %152 = arith.addf %66, %147 : vector<8x128xf32>
    %153 = arith.truncf %152 : vector<8x128xf32> to vector<8x128xbf16>
    %c0_68 = arith.constant 0 : index
    %c0_69 = arith.constant 0 : index
    %154 = vector.load %arg18[%c0_68, %c0_69] : memref<128x128xbf16, #tpu.memory_space<vmem>>, vector<128x128xbf16>
    %cst_70 = arith.constant dense<0.000000e+00> : vector<8x128xf32>
    %155 = tpu.matmul %153, %154, %cst_70 {dimension_numbers = #tpu.dot_dimension_numbers<[1], [0], [0], [1], [0, 0, 1, 1], [], []>} : vector<8x128xbf16>, vector<128x128xbf16>, vector<8x128xf32> -> vector<8x128xf32>
    %c0_71 = arith.constant 0 : index
    %c0_72 = arith.constant 0 : index
    %156 = vector.load %arg19[%c0_71, %c0_72] : memref<1x128xf32, #tpu.memory_space<vmem>>, vector<1x128xf32>
    %157 = vector.broadcast %156 : vector<1x128xf32> to vector<8x128xf32>
    %158 = arith.addf %155, %157 : vector<8x128xf32>
    %159 = vector.extract_strided_slice %158 {offsets = [0, 0], sizes = [8, 1], strides = [1, 1]} : vector<8x128xf32> to vector<8x1xf32>
    %cst_73 = arith.constant 0.000000e+00 : f32
    %160 = vector.broadcast %cst_73 : f32 to vector<8x1xf32>
    %161 = arith.maximumf %159, %160 : vector<8x1xf32>
    %162 = vector.extract_strided_slice %158 {offsets = [0, 1], sizes = [8, 1], strides = [1, 1]} : vector<8x128xf32> to vector<8x1xf32>
    %163 = arith.negf %162 : vector<8x1xf32>
    %164 = math.exp %163 : vector<8x1xf32>
    %cst_74 = arith.constant 1.000000e+00 : f32
    %165 = vector.broadcast %cst_74 : f32 to vector<8x1xf32>
    %166 = arith.addf %165, %164 : vector<8x1xf32>
    %167 = arith.divf %165, %166 : vector<8x1xf32>
    %cst_75 = arith.constant 0.000000e+00 : f32
    %168 = vector.broadcast %cst_75 : f32 to vector<8x1xf32>
    %169 = arith.maximumf %167, %168 : vector<8x1xf32>
    %170 = vector.broadcast %161 : vector<8x1xf32> to vector<8x128xf32>
    %171 = arith.mulf %170, %147 : vector<8x128xf32>
    %172 = arith.addf %66, %171 : vector<8x128xf32>
    %173 = vector.broadcast %169 : vector<8x1xf32> to vector<8x128xf32>
    %174 = arith.mulf %173, %147 : vector<8x128xf32>
    %175 = arith.addf %66, %174 : vector<8x128xf32>
    %c0_76 = arith.constant 0 : index
    %c0_77 = arith.constant 0 : index
    %176 = vector.load %arg5[%c0_76, %c0_77] : memref<32x3xi32, #tpu.memory_space<vmem>>, vector<32x3xi32>
    %177 = vector.extract_strided_slice %176 {offsets = [0, 1], sizes = [32, 1], strides = [1, 1]} : vector<32x3xi32> to vector<32x1xi32>
    %178 = vector.extract_strided_slice %176 {offsets = [0, 2], sizes = [32, 1], strides = [1, 1]} : vector<32x3xi32> to vector<32x1xi32>
    %179 = tpu.iota {dimensions = array<i32: 1>} : vector<32x8xi32>
    %180 = vector.broadcast %177 : vector<32x1xi32> to vector<32x8xi32>
    %181 = arith.cmpi eq, %180, %179 : vector<32x8xi32>
    %182 = arith.extui %181 : vector<32x8xi1> to vector<32x8xi32>
    %183 = arith.sitofp %182 : vector<32x8xi32> to vector<32x8xf32>
    %184 = vector.broadcast %178 : vector<32x1xi32> to vector<32x8xi32>
    %185 = arith.cmpi eq, %184, %179 : vector<32x8xi32>
    %186 = arith.extui %185 : vector<32x8xi1> to vector<32x8xi32>
    %187 = arith.sitofp %186 : vector<32x8xi32> to vector<32x8xf32>
    %188 = arith.truncf %183 : vector<32x8xf32> to vector<32x8xbf16>
    %189 = arith.truncf %172 : vector<8x128xf32> to vector<8x128xbf16>
    %cst_78 = arith.constant dense<0.000000e+00> : vector<32x128xf32>
    %190 = tpu.matmul %188, %189, %cst_78 {dimension_numbers = #tpu.dot_dimension_numbers<[1], [0], [0], [1], [0, 0, 1, 1], [], []>} : vector<32x8xbf16>, vector<8x128xbf16>, vector<32x128xf32> -> vector<32x128xf32>
    %191 = arith.truncf %187 : vector<32x8xf32> to vector<32x8xbf16>
    %192 = arith.truncf %175 : vector<8x128xf32> to vector<8x128xbf16>
    %cst_79 = arith.constant dense<0.000000e+00> : vector<32x128xf32>
    %193 = tpu.matmul %191, %192, %cst_79 {dimension_numbers = #tpu.dot_dimension_numbers<[1], [0], [0], [1], [0, 0, 1, 1], [], []>} : vector<32x8xbf16>, vector<8x128xbf16>, vector<32x128xf32> -> vector<32x128xf32>
    %c4_i32 = arith.constant 4 : i32
    %194 = vector.broadcast %c4_i32 : i32 to vector<8x128xi32>
    %195 = arith.cmpi eq, %74, %194 : vector<8x128xi32>
    %196 = vector.shape_cast %90 : vector<8x1xf32> to vector<8x1xf32>
    %197 = vector.broadcast %196 : vector<8x1xf32> to vector<8x128xf32>
    %198 = arith.select %195, %197, %14 : vector<8x128xi1>, vector<8x128xf32>
    %cst_80 = arith.constant dense<0.000000e+00> : vector<32x128xf32>
    %199 = tpu.matmul %183, %198, %cst_80 {dimension_numbers = #tpu.dot_dimension_numbers<[1], [0], [0], [1], [0, 0, 1, 1], [], []>} : vector<32x8xf32>, vector<8x128xf32>, vector<32x128xf32> -> vector<32x128xf32>
    %cst_81 = arith.constant dense<0.000000e+00> : vector<32x128xf32>
    %200 = tpu.matmul %187, %198, %cst_81 {dimension_numbers = #tpu.dot_dimension_numbers<[1], [0], [0], [1], [0, 0, 1, 1], [], []>} : vector<32x8xf32>, vector<8x128xf32>, vector<32x128xf32> -> vector<32x128xf32>
    %201 = vector.extract_strided_slice %199 {offsets = [0, 0], sizes = [32, 1], strides = [1, 1]} : vector<32x128xf32> to vector<32x1xf32>
    %202 = vector.extract_strided_slice %199 {offsets = [0, 1], sizes = [32, 1], strides = [1, 1]} : vector<32x128xf32> to vector<32x1xf32>
    %203 = vector.extract_strided_slice %199 {offsets = [0, 2], sizes = [32, 1], strides = [1, 1]} : vector<32x128xf32> to vector<32x1xf32>
    %204 = vector.extract_strided_slice %199 {offsets = [0, 3], sizes = [32, 1], strides = [1, 1]} : vector<32x128xf32> to vector<32x1xf32>
    %205 = arith.subf %203, %201 : vector<32x1xf32>
    %cst_82 = arith.constant 1.000000e+00 : f32
    %206 = vector.broadcast %cst_82 : f32 to vector<32x1xf32>
    %207 = arith.addf %205, %206 : vector<32x1xf32>
    %208 = arith.subf %204, %202 : vector<32x1xf32>
    %cst_83 = arith.constant 1.000000e+00 : f32
    %209 = vector.broadcast %cst_83 : f32 to vector<32x1xf32>
    %210 = arith.addf %208, %209 : vector<32x1xf32>
    %211 = vector.extract_strided_slice %200 {offsets = [0, 0], sizes = [32, 1], strides = [1, 1]} : vector<32x128xf32> to vector<32x1xf32>
    %212 = vector.extract_strided_slice %200 {offsets = [0, 1], sizes = [32, 1], strides = [1, 1]} : vector<32x128xf32> to vector<32x1xf32>
    %213 = vector.extract_strided_slice %200 {offsets = [0, 2], sizes = [32, 1], strides = [1, 1]} : vector<32x128xf32> to vector<32x1xf32>
    %214 = vector.extract_strided_slice %200 {offsets = [0, 3], sizes = [32, 1], strides = [1, 1]} : vector<32x128xf32> to vector<32x1xf32>
    %215 = arith.addf %211, %213 : vector<32x1xf32>
    %cst_84 = arith.constant 5.000000e-01 : f32
    %216 = vector.broadcast %cst_84 : f32 to vector<32x1xf32>
    %217 = arith.mulf %215, %216 : vector<32x1xf32>
    %218 = arith.addf %212, %214 : vector<32x1xf32>
    %cst_85 = arith.constant 5.000000e-01 : f32
    %219 = vector.broadcast %cst_85 : f32 to vector<32x1xf32>
    %220 = arith.mulf %218, %219 : vector<32x1xf32>
    %221 = arith.subf %213, %211 : vector<32x1xf32>
    %cst_86 = arith.constant 1.000000e+00 : f32
    %222 = vector.broadcast %cst_86 : f32 to vector<32x1xf32>
    %223 = arith.addf %221, %222 : vector<32x1xf32>
    %224 = tpu.reciprocal %223 {approx = true} : vector<32x1xf32> -> vector<32x1xf32>
    %225 = arith.subf %214, %212 : vector<32x1xf32>
    %cst_87 = arith.constant 1.000000e+00 : f32
    %226 = vector.broadcast %cst_87 : f32 to vector<32x1xf32>
    %227 = arith.addf %225, %226 : vector<32x1xf32>
    %228 = tpu.reciprocal %227 {approx = true} : vector<32x1xf32> -> vector<32x1xf32>
    %229 = arith.subf %201, %217 : vector<32x1xf32>
    %230 = arith.mulf %229, %224 : vector<32x1xf32>
    %231 = arith.subf %202, %220 : vector<32x1xf32>
    %232 = arith.mulf %231, %228 : vector<32x1xf32>
    %233 = arith.subf %203, %217 : vector<32x1xf32>
    %234 = arith.mulf %233, %224 : vector<32x1xf32>
    %235 = arith.subf %204, %220 : vector<32x1xf32>
    %236 = arith.mulf %235, %228 : vector<32x1xf32>
    %237 = arith.mulf %207, %210 : vector<32x1xf32>
    %238 = arith.mulf %237, %224 : vector<32x1xf32>
    %239 = arith.mulf %238, %228 : vector<32x1xf32>
    %c0_88 = arith.constant 0 : index
    %c0_89 = arith.constant 0 : index
    %240 = vector.load %arg20[%c0_88, %c0_89] : memref<8x128xf32, #tpu.memory_space<vmem>>, vector<1x128xf32>
    %241 = vector.broadcast %230 : vector<32x1xf32> to vector<32x128xf32>
    %242 = vector.broadcast %240 : vector<1x128xf32> to vector<32x128xf32>
    %243 = arith.mulf %241, %242 : vector<32x128xf32>
    %c1_90 = arith.constant 1 : index
    %c0_91 = arith.constant 0 : index
    %244 = vector.load %arg20[%c1_90, %c0_91] : memref<8x128xf32, #tpu.memory_space<vmem>>, vector<1x128xf32>
    %245 = vector.broadcast %232 : vector<32x1xf32> to vector<32x128xf32>
    %246 = vector.broadcast %244 : vector<1x128xf32> to vector<32x128xf32>
    %247 = arith.mulf %245, %246 : vector<32x128xf32>
    %248 = arith.addf %243, %247 : vector<32x128xf32>
    %c2_92 = arith.constant 2 : index
    %c0_93 = arith.constant 0 : index
    %249 = vector.load %arg20[%c2_92, %c0_93] : memref<8x128xf32, #tpu.memory_space<vmem>>, vector<1x128xf32>
    %250 = vector.broadcast %234 : vector<32x1xf32> to vector<32x128xf32>
    %251 = vector.broadcast %249 : vector<1x128xf32> to vector<32x128xf32>
    %252 = arith.mulf %250, %251 : vector<32x128xf32>
    %253 = arith.addf %248, %252 : vector<32x128xf32>
    %c3_94 = arith.constant 3 : index
    %c0_95 = arith.constant 0 : index
    %254 = vector.load %arg20[%c3_94, %c0_95] : memref<8x128xf32, #tpu.memory_space<vmem>>, vector<1x128xf32>
    %255 = vector.broadcast %236 : vector<32x1xf32> to vector<32x128xf32>
    %256 = vector.broadcast %254 : vector<1x128xf32> to vector<32x128xf32>
    %257 = arith.mulf %255, %256 : vector<32x128xf32>
    %258 = arith.addf %253, %257 : vector<32x128xf32>
    %c4 = arith.constant 4 : index
    %c0_96 = arith.constant 0 : index
    %259 = vector.load %arg20[%c4, %c0_96] : memref<8x128xf32, #tpu.memory_space<vmem>>, vector<1x128xf32>
    %260 = vector.broadcast %239 : vector<32x1xf32> to vector<32x128xf32>
    %261 = vector.broadcast %259 : vector<1x128xf32> to vector<32x128xf32>
    %262 = arith.mulf %260, %261 : vector<32x128xf32>
    %263 = arith.addf %258, %262 : vector<32x128xf32>
    %c0_97 = arith.constant 0 : index
    %c0_98 = arith.constant 0 : index
    %264 = vector.load %arg21[%c0_97, %c0_98] : memref<1x128xf32, #tpu.memory_space<vmem>>, vector<1x128xf32>
    %265 = vector.broadcast %264 : vector<1x128xf32> to vector<32x128xf32>
    %266 = arith.addf %263, %265 : vector<32x128xf32>
    %cst_99 = arith.constant 0.000000e+00 : f32
    %267 = vector.broadcast %cst_99 : f32 to vector<32x128xf32>
    %268 = arith.maximumf %266, %267 : vector<32x128xf32>
    %269 = arith.mulf %190, %193 : vector<32x128xf32>
    %c0_100 = arith.constant 0 : index
    %c0_101 = arith.constant 0 : index
    %270 = vector.load %arg7[%c0_100, %c0_101] : memref<32x128xbf16, #tpu.memory_space<vmem>>, vector<32x128xbf16>
    %271 = arith.extf %270 : vector<32x128xbf16> to vector<32x128xf32>
    %272 = arith.mulf %269, %271 : vector<32x128xf32>
    %273 = math.tanh %272 : vector<32x128xf32>
    %274 = arith.truncf %273 : vector<32x128xf32> to vector<32x128xbf16>
    %c0_102 = arith.constant 0 : index
    %c0_103 = arith.constant 0 : index
    %275 = vector.load %arg22[%c0_102, %c0_103] : memref<128x128xbf16, #tpu.memory_space<vmem>>, vector<128x128xbf16>
    %cst_104 = arith.constant dense<0.000000e+00> : vector<32x128xf32>
    %276 = tpu.matmul %274, %275, %cst_104 {dimension_numbers = #tpu.dot_dimension_numbers<[1], [0], [0], [1], [0, 0, 1, 1], [], []>} : vector<32x128xbf16>, vector<128x128xbf16>, vector<32x128xf32> -> vector<32x128xf32>
    %277 = math.tanh %268 : vector<32x128xf32>
    %278 = arith.truncf %277 : vector<32x128xf32> to vector<32x128xbf16>
    %c0_105 = arith.constant 0 : index
    %c0_106 = arith.constant 0 : index
    %279 = vector.load %arg23[%c0_105, %c0_106] : memref<128x128xbf16, #tpu.memory_space<vmem>>, vector<128x128xbf16>
    %cst_107 = arith.constant dense<0.000000e+00> : vector<32x128xf32>
    %280 = tpu.matmul %278, %279, %cst_107 {dimension_numbers = #tpu.dot_dimension_numbers<[1], [0], [0], [1], [0, 0, 1, 1], [], []>} : vector<32x128xbf16>, vector<128x128xbf16>, vector<32x128xf32> -> vector<32x128xf32>
    %281 = arith.addf %276, %280 : vector<32x128xf32>
    %c0_108 = arith.constant 0 : index
    %c0_109 = arith.constant 0 : index
    %282 = vector.load %arg24[%c0_108, %c0_109] : memref<1x128xf32, #tpu.memory_space<vmem>>, vector<1x128xf32>
    %283 = vector.broadcast %282 : vector<1x128xf32> to vector<32x128xf32>
    %284 = arith.addf %281, %283 : vector<32x128xf32>
    %285 = vector.extract_strided_slice %199 {offsets = [0, 4], sizes = [32, 1], strides = [1, 1]} : vector<32x128xf32> to vector<32x1xf32>
    %286 = arith.fptosi %285 : vector<32x1xf32> to vector<32x1xi32>
    %287 = vector.extract_strided_slice %200 {offsets = [0, 4], sizes = [32, 1], strides = [1, 1]} : vector<32x128xf32> to vector<32x1xf32>
    %288 = arith.fptosi %287 : vector<32x1xf32> to vector<32x1xi32>
    %c16_i32_110 = arith.constant 16 : i32
    %289 = vector.broadcast %c16_i32_110 : i32 to vector<32x1xi32>
    %290 = arith.muli %286, %289 : vector<32x1xi32>
    %291 = arith.addi %290, %288 : vector<32x1xi32>
    %292 = tpu.iota {dimensions = array<i32: 1>} : vector<32x256xi32>
    %293 = vector.broadcast %291 : vector<32x1xi32> to vector<32x256xi32>
    %294 = arith.cmpi eq, %293, %292 : vector<32x256xi32>
    %295 = arith.extui %294 : vector<32x256xi1> to vector<32x256xi32>
    %296 = arith.sitofp %295 : vector<32x256xi32> to vector<32x256xf32>
    %c0_111 = arith.constant 0 : index
    %c0_112 = arith.constant 0 : index
    %297 = vector.load %arg25[%c0_111, %c0_112] : memref<256x128xf32, #tpu.memory_space<vmem>>, vector<256x128xf32>
    %cst_113 = arith.constant dense<0.000000e+00> : vector<32x128xf32>
    %298 = tpu.matmul %296, %297, %cst_113 {dimension_numbers = #tpu.dot_dimension_numbers<[1], [0], [0], [1], [0, 0, 1, 1], [], []>} : vector<32x256xf32>, vector<256x128xf32>, vector<32x128xf32> -> vector<32x128xf32>
    %299 = arith.addf %284, %298 : vector<32x128xf32>
    %c0_114 = arith.constant 0 : index
    %c0_115 = arith.constant 0 : index
    %300 = vector.load %arg30[%c0_114, %c0_115] : memref<32x128xf32, #tpu.memory_space<vmem>>, vector<32x128xf32>
    tpu.vector_store %arg30[%c0_114, %c0_115], %299 {strides = array<i32>} : memref<32x128xf32, #tpu.memory_space<vmem>>, vector<32x128xf32>,
    %301 = tpu.iota {dimensions = array<i32: 1>} : vector<32x128xi32>
    %c8_i32 = arith.constant 8 : i32
    %302 = vector.broadcast %c8_i32 : i32 to vector<32x128xi32>
    %303 = arith.cmpi slt, %301, %302 : vector<32x128xi32>
    %cst_116 = arith.constant -1.000000e+30 : f32
    %304 = vector.broadcast %cst_116 : f32 to vector<32x128xf32>
    %305 = arith.select %303, %299, %304 : vector<32x128xi1>, vector<32x128xf32>
    %cst_117 = arith.constant dense<0xFF800000> : vector<32xf32>
    %306 = vector.multi_reduction <maximumf>, %305, %cst_117 [1] : vector<32x128xf32> to vector<32xf32>
    %307 = vector.shape_cast %306 : vector<32xf32> to vector<32x1xf32>
    %308 = vector.broadcast %307 : vector<32x1xf32> to vector<32x128xf32>
    %309 = arith.subf %305, %308 : vector<32x128xf32>
    %310 = math.exp %309 : vector<32x128xf32>
    %cst_118 = arith.constant dense<0.000000e+00> : vector<32xf32>
    %311 = vector.multi_reduction <add>, %310, %cst_118 [1] : vector<32x128xf32> to vector<32xf32>
    %312 = vector.shape_cast %311 : vector<32xf32> to vector<32x1xf32>
    %313 = tpu.reciprocal %312 {approx = true} : vector<32x1xf32> -> vector<32x1xf32>
    %314 = vector.broadcast %313 : vector<32x1xf32> to vector<32x128xf32>
    %315 = arith.mulf %310, %314 : vector<32x128xf32>
    %c0_119 = arith.constant 0 : index
    %c0_120 = arith.constant 0 : index
    %316 = vector.load %arg31[%c0_119, %c0_120] : memref<32x128xf32, #tpu.memory_space<vmem>>, vector<32x128xf32>
    tpu.vector_store %arg31[%c0_119, %c0_120], %315 {strides = array<i32>} : memref<32x128xf32, #tpu.memory_space<vmem>>, vector<32x128xf32>,
    return
  }
}

</mosaic_0001>

<llo_original>
// kernel: rel_model_forward.1
$region0: #{rel_model_forward.1}
  #allocation0 [shape = 'u32[]', space=smem, size = 0x4, offset = 0x4, fixed_abs, tag = 'smem constant byte address 0x4 - core index']
  #allocation1 [shape = 'u32[72,128]{1,0:T(1,128)}', space=vmem, size = 0x9000, scoped, tag = 'internal scratch']
  %s0 = inlined_call_operand.smem [shape: u32[32], index: -1, kind: input, shape index: {}]
  %s1 = sld [smem:[%s0]]
  %s2 = scalar_lea.smem %s0, 1
  %s3 = sld [smem:[%s2]]
  %s4 = scalar_lea.smem %s0, 2
  %s5 = sld [smem:[%s4]]
  %s6 = scalar_lea.smem %s0, 3
  %s7 = sld [smem:[%s6]]
  %s8 = scalar_lea.smem %s0, 4
  %s9 = sld [smem:[%s8]]
  %s10 = scalar_lea.smem %s0, 5
  %s11 = sld [smem:[%s10]]
  %s12 = scalar_lea.smem %s0, 6
  %s13 = sld [smem:[%s12]]
  %s14 = scalar_lea.smem %s0, 7
  %s15 = sld [smem:[%s14]]
  %s16 = scalar_lea.smem %s0, 8
  %s17 = sld [smem:[%s16]]
  %s18 = scalar_lea.smem %s0, 9
  %s19 = sld [smem:[%s18]]
  %s20 = scalar_lea.smem %s0, 10
  %s21 = sld [smem:[%s20]]
  %s22 = scalar_lea.smem %s0, 11
  %s23 = sld [smem:[%s22]]
  %s24 = scalar_lea.smem %s0, 12
  %s25 = sld [smem:[%s24]]
  %s26 = scalar_lea.smem %s0, 13
  %s27 = sld [smem:[%s26]]
  %s28 = scalar_lea.smem %s0, 14
  %s29 = sld [smem:[%s28]]
  %s30 = scalar_lea.smem %s0, 15
  %s31 = sld [smem:[%s30]]
  %s32 = scalar_lea.smem %s0, 16
  %s33 = sld [smem:[%s32]]
  %s34 = scalar_lea.smem %s0, 17
  %s35 = sld [smem:[%s34]]
  %s36 = scalar_lea.smem %s0, 18
  %s37 = sld [smem:[%s36]]
  %s38 = scalar_lea.smem %s0, 19
  %s39 = sld [smem:[%s38]]
  %s40 = scalar_lea.smem %s0, 20
  %s41 = sld [smem:[%s40]]
  %s42 = scalar_lea.smem %s0, 21
  %s43 = sld [smem:[%s42]]
  %s44 = scalar_lea.smem %s0, 22
  %s45 = sld [smem:[%s44]]
  %s46 = scalar_lea.smem %s0, 23
  %s47 = sld [smem:[%s46]]
  %s48 = scalar_lea.smem %s0, 24
  %s49 = sld [smem:[%s48]]
  %s50 = scalar_lea.smem %s0, 25
  %s51 = sld [smem:[%s50]]
  %s52 = scalar_lea.smem %s0, 26
  %s53 = sld [smem:[%s52]]
  %s54 = scalar_lea.smem %s0, 27
  %s55 = sld [smem:[%s54]]
  %s56 = scalar_lea.smem %s0, 28
  %s57 = sld [smem:[%s56]]
  %s58 = scalar_lea.smem %s0, 29
  %s59 = sld [smem:[%s58]]
  %s60 = scalar_lea.smem %s0, 30
  %s61 = sld [smem:[%s60]]
  %s62 = scalar_lea.smem %s0, 31
  %s63 = sld [smem:[%s62]]
  %64 = xla_tuple %s53, %s55, %s57, %s59, %s61, %s63
  %s65 = sld [smem:[#allocation0]]
  $region182: #{rel_model_forward.1} parent=0
    _
  %s67 = ssub.s32 1, %s65
  %s68 = scalar_select 0, %s67, %s65
  $region1: #{rel_model_forward.1} parent=0
    #allocation2 [shape = 'u8[32768]{0}', space=vmem, size = 0x8000, scoped, tag = 'input window, operand 12, single buffered']
    #allocation3 [shape = 's32[1]{0}', space=sflag, size = 0x4, scoped, tag = 'scoped memory for rel_model_forward.1']
    #allocation4 [shape = 's32[1]{0}', space=sflag, size = 0x4, scoped, tag = 'scoped memory for rel_model_forward.1']
    #allocation5 [shape = 'u8[32768]{0}', space=vmem, size = 0x8000, scoped, tag = 'input window, operand 14, single buffered']
    #allocation6 [shape = 's32[1]{0}', space=sflag, size = 0x4, scoped, tag = 'scoped memory for rel_model_forward.1']
    #allocation7 [shape = 'u8[32768]{0}', space=vmem, size = 0x8000, scoped, tag = 'input window, operand 16, single buffered']
    #allocation8 [shape = 'u8[32768]{0}', space=vmem, size = 0x8000, scoped, tag = 'input window, operand 18, single buffered']
    #allocation9 [shape = 's32[1]{0}', space=sflag, size = 0x4, scoped, tag = 'scoped memory for rel_model_forward.1']
    #allocation10 [shape = 'u8[32768]{0}', space=vmem, size = 0x8000, scoped, tag = 'input window, operand 22, single buffered']
    #allocation11 [shape = 'u8[32768]{0}', space=vmem, size = 0x8000, scoped, tag = 'input window, operand 23, single buffered']
    #allocation12 [shape = 's32[1]{0}', space=sflag, size = 0x4, scoped, tag = 'scoped memory for rel_model_forward.1']
    #allocation13 [shape = 'u8[131072]{0}', space=vmem, size = 0x20000, scoped, tag = 'input window, operand 25, single buffered']
    #allocation14 [shape = 'u8[4096]{0}', space=vmem, size = 0x1000, scoped, tag = 'output window, operand 0, single buffered']
    %69 = vsyncpa [#allocation3], 0
    %70 = vsyncpa [#allocation6], 0
    %71 = vsyncpa [#allocation9], 0
    %72 = vsyncpa [#allocation12], 0
    %73 = vsyncpa [#allocation4], 0
    // Predicated region
    $region2: #{rel_model_forward.1} parent=1 // pred_check
      _
    $region3: #{rel_model_forward.1} parent=1 // pred_check_branch
      %75 = sbr.rel (0) target = $region5
    $region4: #{rel_model_forward.1} parent=1 // pred_region
      _
    $region5: #{rel_model_forward.1} parent=1 // pred_fallthru
      _
    // Predicated region
    $region6: #{rel_model_forward.1} parent=1 // pred_check
      _
    $region7: #{rel_model_forward.1} parent=1 // pred_check_branch
      %77 = sbr.rel (0) target = $region9
    $region8: #{rel_model_forward.1} parent=1 // pred_region
      _
    $region9: #{rel_model_forward.1} parent=1 // pred_fallthru
      _
    // Predicated region
    $region10: #{rel_model_forward.1} parent=1 // pred_check
      _
    $region11: #{rel_model_forward.1} parent=1 // pred_check_branch
      %79 = sbr.rel (0) target = $region13
    $region12: #{rel_model_forward.1} parent=1 // pred_region
      _
    $region13: #{rel_model_forward.1} parent=1 // pred_fallthru
      _
    // Predicated region
    $region14: #{rel_model_forward.1} parent=1 // pred_check
      _
    $region15: #{rel_model_forward.1} parent=1 // pred_check_branch
      %81 = sbr.rel (0) target = $region17
    $region16: #{rel_model_forward.1} parent=1 // pred_region
      _
    $region17: #{rel_model_forward.1} parent=1 // pred_fallthru
      _
    // Predicated region
    $region18: #{rel_model_forward.1} parent=1 // pred_check
      _
    $region19: #{rel_model_forward.1} parent=1 // pred_check_branch
      %83 = sbr.rel (0) target = $region21
    $region20: #{rel_model_forward.1} parent=1 // pred_region
      _
    $region21: #{rel_model_forward.1} parent=1 // pred_fallthru
      _
    // Predicated region
    $region22: #{rel_model_forward.1} parent=1 // pred_check
      _
    $region23: #{rel_model_forward.1} parent=1 // pred_check_branch
      %85 = sbr.rel (0) target = $region25
    $region24: #{rel_model_forward.1} parent=1 // pred_region
      _
    $region25: #{rel_model_forward.1} parent=1 // pred_fallthru
      _
    // Predicated region
    $region26: #{rel_model_forward.1} parent=1 // pred_check
      _
    $region27: #{rel_model_forward.1} parent=1 // pred_check_branch
      %87 = sbr.rel (0) target = $region29
    $region28: #{rel_model_forward.1} parent=1 // pred_region
      _
    $region29: #{rel_model_forward.1} parent=1 // pred_fallthru
      _
    // Predicated region
    $region30: #{rel_model_forward.1} parent=1 // pred_check
      _
    $region31: #{rel_model_forward.1} parent=1 // pred_check_branch
      %89 = sbr.rel (0) target = $region33
    $region32: #{rel_model_forward.1} parent=1 // pred_region
      _
    $region33: #{rel_model_forward.1} parent=1 // pred_fallthru
      _
    // Predicated region
    $region34: #{rel_model_forward.1} parent=1 // pred_check
      _
    $region35: #{rel_model_forward.1} parent=1 // pred_check_branch
      %91 = sbr.rel (0) target = $region37
    $region36: #{rel_model_forward.1} parent=1 // pred_region
      _
    $region37: #{rel_model_forward.1} parent=1 // pred_fallthru
      _
    // Predicated region
    $region38: #{rel_model_forward.1} parent=1 // pred_check
      _
    $region39: #{rel_model_forward.1} parent=1 // pred_check_branch
      %93 = sbr.rel (0) target = $region41
    $region40: #{rel_model_forward.1} parent=1 // pred_region
      _
    $region41: #{rel_model_forward.1} parent=1 // pred_fallthru
      _
    // Predicated region
    $region42: #{rel_model_forward.1} parent=1 // pred_check
      _
    $region43: #{rel_model_forward.1} parent=1 // pred_check_branch
      %95 = sbr.rel (0) target = $region45
    $region44: #{rel_model_forward.1} parent=1 // pred_region
      _
    $region45: #{rel_model_forward.1} parent=1 // pred_fallthru
      _
    // Predicated region
    $region46: #{rel_model_forward.1} parent=1 // pred_check
      _
    $region47: #{rel_model_forward.1} parent=1 // pred_check_branch
      %97 = sbr.rel (0) target = $region49
    $region48: #{rel_model_forward.1} parent=1 // pred_region
      _
    $region49: #{rel_model_forward.1} parent=1 // pred_fallthru
      _
    // Predicated region
    $region50: #{rel_model_forward.1} parent=1 // pred_check
      _
    $region51: #{rel_model_forward.1} parent=1 // pred_check_branch
      %99 = sbr.rel (0) target = $region53
    $region52: #{rel_model_forward.1} parent=1 // pred_region
      %101 = vsyncadd [#allocation3], 0
      %s102 = sshll.u32 %s25, 4
      %s103 = int_to_ptr.hbm [resolvable:$true] %s102
      %s104 = sshll.u32 [#allocation2], 4
      %s105 = int_to_ptr.vmem [resolvable:$true] %s104
      %110 = dma.hbm_to_vmem [thread:$0]  %s103, 1024, %s105, [#allocation3], 64, 64, 4
    $region53: #{rel_model_forward.1} parent=1 // pred_fallthru
      _
    // Predicated region
    $region54: #{rel_model_forward.1} parent=1 // pred_check
      _
    $region55: #{rel_model_forward.1} parent=1 // pred_check_branch
      %112 = sbr.rel (0) target = $region57
    $region56: #{rel_model_forward.1} parent=1 // pred_region
      _
    $region57: #{rel_model_forward.1} parent=1 // pred_fallthru
      _
    // Predicated region
    $region58: #{rel_model_forward.1} parent=1 // pred_check
      _
    $region59: #{rel_model_forward.1} parent=1 // pred_check_branch
      %114 = sbr.rel (0) target = $region61
    $region60: #{rel_model_forward.1} parent=1 // pred_region
      %116 = vsyncadd [#allocation6], 0
      %s117 = sshll.u32 %s29, 4
      %s118 = int_to_ptr.hbm [resolvable:$true] %s117
      %s119 = sshll.u32 [#allocation5], 4
      %s120 = int_to_ptr.vmem [resolvable:$true] %s119
      %125 = dma.hbm_to_vmem [thread:$0]  %s118, 1024, %s120, [#allocation6], 64, 64, 4
    $region61: #{rel_model_forward.1} parent=1 // pred_fallthru
      _
    // Predicated region
    $region62: #{rel_model_forward.1} parent=1 // pred_check
      _
    $region63: #{rel_model_forward.1} parent=1 // pred_check_branch
      %127 = sbr.rel (0) target = $region65
    $region64: #{rel_model_forward.1} parent=1 // pred_region
      _
    $region65: #{rel_model_forward.1} parent=1 // pred_fallthru
      _
    // Predicated region
    $region66: #{rel_model_forward.1} parent=1 // pred_check
      _
    $region67: #{rel_model_forward.1} parent=1 // pred_check_branch
      %129 = sbr.rel (0) target = $region69
    $region68: #{rel_model_forward.1} parent=1 // pred_region
      %131 = vsyncadd [#allocation6], 0
      %s132 = sshll.u32 %s33, 4
      %s133 = int_to_ptr.hbm [resolvable:$true] %s132
      %s134 = sshll.u32 [#allocation7], 4
      %s135 = int_to_ptr.vmem [resolvable:$true] %s134
      %140 = dma.hbm_to_vmem [thread:$0]  %s133, 1024, %s135, [#allocation6], 64, 64, 4
    $region69: #{rel_model_forward.1} parent=1 // pred_fallthru
      _
    // Predicated region
    $region70: #{rel_model_forward.1} parent=1 // pred_check
      _
    $region71: #{rel_model_forward.1} parent=1 // pred_check_branch
      %142 = sbr.rel (0) target = $region73
    $region72: #{rel_model_forward.1} parent=1 // pred_region
      _
    $region73: #{rel_model_forward.1} parent=1 // pred_fallthru
      _
    // Predicated region
    $region74: #{rel_model_forward.1} parent=1 // pred_check
      _
    $region75: #{rel_model_forward.1} parent=1 // pred_check_branch
      %144 = sbr.rel (0) target = $region77
    $region76: #{rel_model_forward.1} parent=1 // pred_region
      %146 = vsyncadd [#allocation9], 0
      %s147 = sshll.u32 %s37, 4
      %s148 = int_to_ptr.hbm [resolvable:$true] %s147
      %s149 = sshll.u32 [#allocation8], 4
      %s150 = int_to_ptr.vmem [resolvable:$true] %s149
      %155 = dma.hbm_to_vmem [thread:$0]  %s148, 1024, %s150, [#allocation9], 64, 64, 4
    $region77: #{rel_model_forward.1} parent=1 // pred_fallthru
      _
    // Predicated region
    $region78: #{rel_model_forward.1} parent=1 // pred_check
      _
    $region79: #{rel_model_forward.1} parent=1 // pred_check_branch
      %157 = sbr.rel (0) target = $region81
    $region80: #{rel_model_forward.1} parent=1 // pred_region
      _
    $region81: #{rel_model_forward.1} parent=1 // pred_fallthru
      _
    // Predicated region
    $region82: #{rel_model_forward.1} parent=1 // pred_check
      _
    $region83: #{rel_model_forward.1} parent=1 // pred_check_branch
      %159 = sbr.rel (0) target = $region85
    $region84: #{rel_model_forward.1} parent=1 // pred_region
      _
    $region85: #{rel_model_forward.1} parent=1 // pred_fallthru
      _
    // Predicated region
    $region86: #{rel_model_forward.1} parent=1 // pred_check
      _
    $region87: #{rel_model_forward.1} parent=1 // pred_check_branch
      %161 = sbr.rel (0) target = $region89
    $region88: #{rel_model_forward.1} parent=1 // pred_region
      _
    $region89: #{rel_model_forward.1} parent=1 // pred_fallthru
      _
    // Predicated region
    $region90: #{rel_model_forward.1} parent=1 // pred_check
      _
    $region91: #{rel_model_forward.1} parent=1 // pred_check_branch
      %163 = sbr.rel (0) target = $region93
    $region92: #{rel_model_forward.1} parent=1 // pred_region
      %165 = vsyncadd [#allocation9], 0
      %s166 = sshll.u32 %s45, 4
      %s167 = int_to_ptr.hbm [resolvable:$true] %s166
      %s168 = sshll.u32 [#allocation10], 4
      %s169 = int_to_ptr.vmem [resolvable:$true] %s168
      %174 = dma.hbm_to_vmem [thread:$0]  %s167, 1024, %s169, [#allocation9], 64, 64, 4
    $region93: #{rel_model_forward.1} parent=1 // pred_fallthru
      _
    // Predicated region
    $region94: #{rel_model_forward.1} parent=1 // pred_check
      _
    $region95: #{rel_model_forward.1} parent=1 // pred_check_branch
      %176 = sbr.rel (0) target = $region97
    $region96: #{rel_model_forward.1} parent=1 // pred_region
      %178 = vsyncadd [#allocation12], 0
      %s179 = sshll.u32 %s47, 4
      %s180 = int_to_ptr.hbm [resolvable:$true] %s179
      %s181 = sshll.u32 [#allocation11], 4
      %s182 = int_to_ptr.vmem [resolvable:$true] %s181
      %187 = dma.hbm_to_vmem [thread:$0]  %s180, 1024, %s182, [#allocation12], 64, 64, 4
    $region97: #{rel_model_forward.1} parent=1 // pred_fallthru
      _
    // Predicated region
    $region98: #{rel_model_forward.1} parent=1 // pred_check
      _
    $region99: #{rel_model_forward.1} parent=1 // pred_check_branch
      %189 = sbr.rel (0) target = $region101
    $region100: #{rel_model_forward.1} parent=1 // pred_region
      _
    $region101: #{rel_model_forward.1} parent=1 // pred_fallthru
      _
    // Predicated region
    $region102: #{rel_model_forward.1} parent=1 // pred_check
      _
    $region103: #{rel_model_forward.1} parent=1 // pred_check_branch
      %191 = sbr.rel (0) target = $region105
    $region104: #{rel_model_forward.1} parent=1 // pred_region
      %193 = vsyncadd [#allocation12], 0
      %s194 = sshll.u32 %s51, 4
      %s195 = int_to_ptr.hbm [resolvable:$true] %s194
      %s196 = sshll.u32 [#allocation13], 4
      %s197 = int_to_ptr.vmem [resolvable:$true] %s196
      %202 = dma.hbm_to_vmem [thread:$0]  %s195, 4096, %s197, [#allocation12], 128, 128, 8
    $region105: #{rel_model_forward.1} parent=1 // pred_fallthru
      _
    // Predicated region
    $region106: #{rel_model_forward.1} parent=1 // pred_check
      _
    $region107: #{rel_model_forward.1} parent=1 // pred_check_branch
      %204 = sbr.rel (0) target = $region109
    $region108: #{rel_model_forward.1} parent=1 // pred_region
      %206 = dma.done [#allocation3], 1024
    $region109: #{rel_model_forward.1} parent=1 // pred_fallthru
      _
    // Predicated region
    $region110: #{rel_model_forward.1} parent=1 // pred_check
      _
    $region111: #{rel_model_forward.1} parent=1 // pred_check_branch
      %208 = sbr.rel (0) target = $region113
    $region112: #{rel_model_forward.1} parent=1 // pred_region
      %210 = dma.done [#allocation6], 1024
    $region113: #{rel_model_forward.1} parent=1 // pred_fallthru
      _
    // Predicated region
    $region114: #{rel_model_forward.1} parent=1 // pred_check
      _
    $region115: #{rel_model_forward.1} parent=1 // pred_check_branch
      %212 = sbr.rel (0) target = $region117
    $region116: #{rel_model_forward.1} parent=1 // pred_region
      %214 = dma.done [#allocation6], 1024
    $region117: #{rel_model_forward.1} parent=1 // pred_fallthru
      _
    // Predicated region
    $region118: #{rel_model_forward.1} parent=1 // pred_check
      _
    $region119: #{rel_model_forward.1} parent=1 // pred_check_branch
      %216 = sbr.rel (0) target = $region121
    $region120: #{rel_model_forward.1} parent=1 // pred_region
      %218 = dma.done [#allocation9], 1024
    $region121: #{rel_model_forward.1} parent=1 // pred_fallthru
      _
    // Predicated region
    $region122: #{rel_model_forward.1} parent=1 // pred_check
      _
    $region123: #{rel_model_forward.1} parent=1 // pred_check_branch
      %220 = sbr.rel (0) target = $region125
    $region124: #{rel_model_forward.1} parent=1 // pred_region
      %222 = dma.done [#allocation9], 1024
    $region125: #{rel_model_forward.1} parent=1 // pred_fallthru
      _
    // Predicated region
    $region126: #{rel_model_forward.1} parent=1 // pred_check
      _
    $region127: #{rel_model_forward.1} parent=1 // pred_check_branch
      %224 = sbr.rel (0) target = $region129
    $region128: #{rel_model_forward.1} parent=1 // pred_region
      %226 = dma.done [#allocation12], 1024
    $region129: #{rel_model_forward.1} parent=1 // pred_fallthru
      _
    // Predicated region
    $region130: #{rel_model_forward.1} parent=1 // pred_check
      _
    $region131: #{rel_model_forward.1} parent=1 // pred_check_branch
      %228 = sbr.rel (0) target = $region133
    $region132: #{rel_model_forward.1} parent=1 // pred_region
      %230 = dma.done [#allocation12], 4096
    $region133: #{rel_model_forward.1} parent=1 // pred_fallthru
      _
    %v232 = vld [vmem:[%s1] sm:$0xff]
    %233 = vmax.xlane.f32.xlu0 %v232
    %v234 = vpop.xlane.xlu0 %233
    %v235 = vsub.f32 %v232, %v234
    %v236 = vmul.f32 %v235, 1.442695
    %v237 = vpow.pop %v236
    %238 = vadd.xlane.f32.xlu0 %v237
    %v239 = vpop.xlane.xlu0 %238
    %v240 = vrcp.pop %v239
    %v241 = vmul.f32 %v237, %v240
    %v242 = vpack.c.bf16 %v241, %v241
    %v243 = vld [vmem:[%s17] sm:$0xf]
    %v244 = vld [vmem:[%s17 + $0x4] sm:$0xf]
    %v245 = vld [vmem:[%s17 + $0x8] sm:$0xf]
    %v246 = vld [vmem:[%s17 + $0xc] sm:$0xf]
    %v247 = vld [vmem:[%s17 + $0x10] sm:$0xf]
    %v248 = vld [vmem:[%s17 + $0x14] sm:$0xf]
    %v249 = vld [vmem:[%s17 + $0x18] sm:$0xf]
    %v250 = vld [vmem:[%s17 + $0x1c] sm:$0xf]
    %v251 = vld [vmem:[%s17 + $0x20] sm:$0xf]
    %v252 = vld [vmem:[%s17 + $0x24] sm:$0xf]
    %v253 = vld [vmem:[%s17 + $0x28] sm:$0xf]
    %v254 = vld [vmem:[%s17 + $0x2c] sm:$0xf]
    %v255 = vld [vmem:[%s17 + $0x30] sm:$0xf]
    %v256 = vld [vmem:[%s17 + $0x34] sm:$0xf]
    %v257 = vld [vmem:[%s17 + $0x38] sm:$0xf]
    %v258 = vld [vmem:[%s17 + $0x3c] sm:$0xf]
    %v275 = vunpack.c.l.b16 %v243
    %v276 = vunpack.c.l.b16 %v244
    %v277 = vunpack.c.l.b16 %v245
    %v278 = vunpack.c.l.b16 %v246
    %v279 = vunpack.c.l.b16 %v247
    %v280 = vunpack.c.l.b16 %v248
    %v281 = vunpack.c.l.b16 %v249
    %v282 = vunpack.c.l.b16 %v250
    %v283 = vunpack.c.l.b16 %v251
    %v284 = vunpack.c.l.b16 %v252
    %v285 = vunpack.c.l.b16 %v253
    %v286 = vunpack.c.l.b16 %v254
    %v287 = vunpack.c.l.b16 %v255
    %v288 = vunpack.c.l.b16 %v256
    %v289 = vunpack.c.l.b16 %v257
    %v290 = vunpack.c.l.b16 %v258
    %v291 = vpack.c.b16 %v276, %v275
    %v292 = vpack.c.b16 %v278, %v277
    %v293 = vpack.c.b16 %v280, %v279
    %v294 = vpack.c.b16 %v282, %v281
    %v295 = vpack.c.b16 %v284, %v283
    %v296 = vpack.c.b16 %v286, %v285
    %v297 = vpack.c.b16 %v288, %v287
    %v298 = vpack.c.b16 %v290, %v289
    %307 = vmatpush.bf16.msra.mxu0 %v298
    %308 = vmatpush.bf16.msra.mxu0 %v297
    %309 = vmatpush.bf16.msra.mxu0 %v296
    %310 = vmatpush.bf16.msra.mxu0 %v295
    %311 = vmatpush.bf16.msra.mxu0 %v294
    %312 = vmatpush.bf16.msra.mxu0 %v293
    %313 = vmatpush.bf16.msra.mxu0 %v292
    %314 = vmatpush.bf16.msra.mxu0 %v291
    %315 = vmatmul.bf16.gmra.mxu0 %v242
    %v316 = vpop.f32.mrf.mxu0
    %v317 = vadd.f32 0.0, %v316
    %v318 = vpop.f32.mrf.mxu0
    %319 = vdwg.mxu0
    %v320 = vld [vmem:[%s3] sm:$0xff]
    %322 = vrot.lane.b32.xlu0 %v320, 2
    %v323 = vpop.permute.xlu0 %322
    %v325 = vsub.f32 %v320, %v323
    %v326 = vadd.f32 %v325, 1.0
    %327 = vrot.lane.b32.xlu0 %v320, 126
    %v328 = vpop.permute.xlu0 %327
    %v330 = vadd.f32 %v320, %v328
    %v331 = vmul.f32 %v330, 0.5
    %v332 = vld [vmem:[%s19] sm:$0x1]
    %334 = vset.pattern.permute.xlu0 0
    %335 = vperm.xlu0 %334, %v331
    %v336 = vpop.permute.xlu0 %335
    %v338 = vperm.slane %v332, 0
    %v339 = vmul.f32 %v336, %v338
    %v340 = vld [vmem:[%s19 + $0x1] sm:$0x1]
    %341 = vset.pattern.permute.xlu0 1
    %342 = vperm.xlu0 %341, %v331
    %v343 = vpop.permute.xlu0 %342
    %v345 = vperm.slane %v340, 0
    %v346 = vmul.f32 %v343, %v345
    %v347 = vadd.f32 %v339, %v346
    %v348 = vld [vmem:[%s19 + $0x2] sm:$0x1]
    %350 = vset.pattern.permute.xlu0 2
    %351 = vperm.xlu0 %350, %v326
    %v352 = vpop.permute.xlu0 %351
    %v354 = vperm.slane %v348, 0
    %v355 = vmul.f32 %v352, %v354
    %v356 = vadd.f32 %v347, %v355
    %v357 = vld [vmem:[%s19 + $0x3] sm:$0x1]
    %358 = vset.pattern.permute.xlu0 3
    %359 = vperm.xlu0 %358, %v326
    %v360 = vpop.permute.xlu0 %359
    %v362 = vperm.slane %v357, 0
    %v363 = vmul.f32 %v360, %v362
    %v364 = vadd.f32 %v356, %v363
    %v365 = vld [vmem:[%s21] sm:$0x1]
    %v367 = vperm.slane %v365, 0
    %v369 = vadd.f32 %v364, %v367
    %v370 = vmax.f32 %v369, 0.0
    %v371 = vpack.c.bf16 %v317, %v317
    %v372 = vld [vmem:[%s23] sm:$0xf]
    %v373 = vld [vmem:[%s23 + $0x4] sm:$0xf]
    %v374 = vld [vmem:[%s23 + $0x8] sm:$0xf]
    %v375 = vld [vmem:[%s23 + $0xc] sm:$0xf]
    %v376 = vld [vmem:[%s23 + $0x10] sm:$0xf]
    %v377 = vld [vmem:[%s23 + $0x14] sm:$0xf]
    %v378 = vld [vmem:[%s23 + $0x18] sm:$0xf]
    %v379 = vld [vmem:[%s23 + $0x1c] sm:$0xf]
    %v380 = vld [vmem:[%s23 + $0x20] sm:$0xf]
    %v381 = vld [vmem:[%s23 + $0x24] sm:$0xf]
    %v382 = vld [vmem:[%s23 + $0x28] sm:$0xf]
    %v383 = vld [vmem:[%s23 + $0x2c] sm:$0xf]
    %v384 = vld [vmem:[%s23 + $0x30] sm:$0xf]
    %v385 = vld [vmem:[%s23 + $0x34] sm:$0xf]
    %v386 = vld [vmem:[%s23 + $0x38] sm:$0xf]
    %v387 = vld [vmem:[%s23 + $0x3c] sm:$0xf]
    %v388 = vpack.c.bf16 %v370, %v370
    %v389 = vld [vmem:[#allocation2] sm:$0xf]
    %v390 = vld [vmem:[#allocation2 + $0x4] sm:$0xf]
    %v391 = vld [vmem:[#allocation2 + $0x8] sm:$0xf]
    %v392 = vld [vmem:[#allocation2 + $0xc] sm:$0xf]
    %v393 = vld [vmem:[#allocation2 + $0x10] sm:$0xf]
    %v394 = vld [vmem:[#allocation2 + $0x14] sm:$0xf]
    %v395 = vld [vmem:[#allocation2 + $0x18] sm:$0xf]
    %v396 = vld [vmem:[#allocation2 + $0x1c] sm:$0xf]
    %v397 = vld [vmem:[#allocation2 + $0x20] sm:$0xf]
    %v398 = vld [vmem:[#allocation2 + $0x24] sm:$0xf]
    %v399 = vld [vmem:[#allocation2 + $0x28] sm:$0xf]
    %v400 = vld [vmem:[#allocation2 + $0x2c] sm:$0xf]
    %v401 = vld [vmem:[#allocation2 + $0x30] sm:$0xf]
    %v402 = vld [vmem:[#allocation2 + $0x34] sm:$0xf]
    %v403 = vld [vmem:[#allocation2 + $0x38] sm:$0xf]
    %v404 = vld [vmem:[#allocation2 + $0x3c] sm:$0xf]
    %v421 = vunpack.c.l.b16 %v389
    %v422 = vunpack.c.l.b16 %v390
    %v423 = vunpack.c.l.b16 %v391
    %v424 = vunpack.c.l.b16 %v392
    %v425 = vunpack.c.l.b16 %v393
    %v426 = vunpack.c.l.b16 %v394
    %v427 = vunpack.c.l.b16 %v395
    %v428 = vunpack.c.l.b16 %v396
    %v429 = vunpack.c.l.b16 %v397
    %v430 = vunpack.c.l.b16 %v398
    %v431 = vunpack.c.l.b16 %v399
    %v432 = vunpack.c.l.b16 %v400
    %v433 = vunpack.c.l.b16 %v401
    %v434 = vunpack.c.l.b16 %v402
    %v435 = vunpack.c.l.b16 %v403
    %v436 = vunpack.c.l.b16 %v404
    %v437 = vpack.c.b16 %v422, %v421
    %v438 = vpack.c.b16 %v424, %v423
    %v439 = vpack.c.b16 %v426, %v425
    %v440 = vpack.c.b16 %v428, %v427
    %v441 = vpack.c.b16 %v430, %v429
    %v442 = vpack.c.b16 %v432, %v431
    %v443 = vpack.c.b16 %v434, %v433
    %v444 = vpack.c.b16 %v436, %v435
    %453 = vmatpush.bf16.msra.mxu0 %v444
    %454 = vmatpush.bf16.msra.mxu0 %v443
    %455 = vmatpush.bf16.msra.mxu0 %v442
    %456 = vmatpush.bf16.msra.mxu0 %v441
    %457 = vmatpush.bf16.msra.mxu0 %v440
    %458 = vmatpush.bf16.msra.mxu0 %v439
    %459 = vmatpush.bf16.msra.mxu0 %v438
    %460 = vmatpush.bf16.msra.mxu0 %v437
    %461 = vmatmul.bf16.gmra.mxu0 %v388
    %v462 = vpop.f32.mrf.mxu0
    %v463 = vadd.f32 0.0, %v462
    %v464 = vpop.f32.mrf.mxu0
    %465 = vdwg.mxu0
    %v482 = vunpack.c.l.b16 %v372
    %v483 = vunpack.c.l.b16 %v373
    %v484 = vunpack.c.l.b16 %v374
    %v485 = vunpack.c.l.b16 %v375
    %v486 = vunpack.c.l.b16 %v376
    %v487 = vunpack.c.l.b16 %v377
    %v488 = vunpack.c.l.b16 %v378
    %v489 = vunpack.c.l.b16 %v379
    %v490 = vunpack.c.l.b16 %v380
    %v491 = vunpack.c.l.b16 %v381
    %v492 = vunpack.c.l.b16 %v382
    %v493 = vunpack.c.l.b16 %v383
    %v494 = vunpack.c.l.b16 %v384
    %v495 = vunpack.c.l.b16 %v385
    %v496 = vunpack.c.l.b16 %v386
    %v497 = vunpack.c.l.b16 %v387
    %v498 = vpack.c.b16 %v483, %v482
    %v499 = vpack.c.b16 %v485, %v484
    %v500 = vpack.c.b16 %v487, %v486
    %v501 = vpack.c.b16 %v489, %v488
    %v502 = vpack.c.b16 %v491, %v490
    %v503 = vpack.c.b16 %v493, %v492
    %v504 = vpack.c.b16 %v495, %v494
    %v505 = vpack.c.b16 %v497, %v496
    %514 = vmatpush.bf16.msra.mxu0 %v505
    %515 = vmatpush.bf16.msra.mxu0 %v504
    %516 = vmatpush.bf16.msra.mxu0 %v503
    %517 = vmatpush.bf16.msra.mxu0 %v502
    %518 = vmatpush.bf16.msra.mxu0 %v501
    %519 = vmatpush.bf16.msra.mxu0 %v500
    %520 = vmatpush.bf16.msra.mxu0 %v499
    %521 = vmatpush.bf16.msra.mxu0 %v498
    %522 = vmatmul.bf16.gmra.mxu0 %v371
    %v523 = vpop.f32.mrf.mxu0
    %v524 = vadd.f32 %v463, %v523
    %v525 = vpop.f32.mrf.mxu0
    %526 = vdwg.mxu0
    %v527 = vld [vmem:[%s27] sm:$0x1]
    %v529 = vperm.slane %v527, 0
    %v531 = vadd.f32 %v524, %v529
    %v532 = vmax.f32 %v531, 0.0
    %v533 = vpack.c.bf16 %v532, %v532
    %v534 = vld [vmem:[#allocation5] sm:$0xf]
    %v535 = vld [vmem:[#allocation5 + $0x4] sm:$0xf]
    %v536 = vld [vmem:[#allocation5 + $0x8] sm:$0xf]
    %v537 = vld [vmem:[#allocation5 + $0xc] sm:$0xf]
    %v538 = vld [vmem:[#allocation5 + $0x10] sm:$0xf]
    %v539 = vld [vmem:[#allocation5 + $0x14] sm:$0xf]
    %v540 = vld [vmem:[#allocation5 + $0x18] sm:$0xf]
    %v541 = vld [vmem:[#allocation5 + $0x1c] sm:$0xf]
    %v542 = vld [vmem:[#allocation5 + $0x20] sm:$0xf]
    %v543 = vld [vmem:[#allocation5 + $0x24] sm:$0xf]
    %v544 = vld [vmem:[#allocation5 + $0x28] sm:$0xf]
    %v545 = vld [vmem:[#allocation5 + $0x2c] sm:$0xf]
    %v546 = vld [vmem:[#allocation5 + $0x30] sm:$0xf]
    %v547 = vld [vmem:[#allocation5 + $0x34] sm:$0xf]
    %v548 = vld [vmem:[#allocation5 + $0x38] sm:$0xf]
    %v549 = vld [vmem:[#allocation5 + $0x3c] sm:$0xf]
    %v550 = vld [vmem:[%s31] sm:$0x1]
    %v552 = vperm.slane %v550, 0
    %v570 = vunpack.c.l.b16 %v534
    %v571 = vunpack.c.l.b16 %v535
    %v572 = vunpack.c.l.b16 %v536
    %v573 = vunpack.c.l.b16 %v537
    %v574 = vunpack.c.l.b16 %v538
    %v575 = vunpack.c.l.b16 %v539
    %v576 = vunpack.c.l.b16 %v540
    %v577 = vunpack.c.l.b16 %v541
    %v578 = vunpack.c.l.b16 %v542
    %v579 = vunpack.c.l.b16 %v543
    %v580 = vunpack.c.l.b16 %v544
    %v581 = vunpack.c.l.b16 %v545
    %v582 = vunpack.c.l.b16 %v546
    %v583 = vunpack.c.l.b16 %v547
    %v584 = vunpack.c.l.b16 %v548
    %v585 = vunpack.c.l.b16 %v549
    %v586 = vpack.c.b16 %v571, %v570
    %v587 = vpack.c.b16 %v573, %v572
    %v588 = vpack.c.b16 %v575, %v574
    %v589 = vpack.c.b16 %v577, %v576
    %v590 = vpack.c.b16 %v579, %v578
    %v591 = vpack.c.b16 %v581, %v580
    %v592 = vpack.c.b16 %v583, %v582
    %v593 = vpack.c.b16 %v585, %v584
    %602 = vmatpush.bf16.msra.mxu0 %v593
    %603 = vmatpush.bf16.msra.mxu0 %v592
    %604 = vmatpush.bf16.msra.mxu0 %v591
    %605 = vmatpush.bf16.msra.mxu0 %v590
    %606 = vmatpush.bf16.msra.mxu0 %v589
    %607 = vmatpush.bf16.msra.mxu0 %v588
    %608 = vmatpush.bf16.msra.mxu0 %v587
    %609 = vmatpush.bf16.msra.mxu0 %v586
    %610 = vmatmul.bf16.gmra.mxu0 %v533
    %v611 = vpop.f32.mrf.mxu0
    %v612 = vadd.f32 %v552, %v611
    %v613 = vpop.f32.mrf.mxu0
    %614 = vdwg.mxu0
    %615 = vst [vmem:[#allocation14] sm:$0xff] %v612
    %v616 = vlaneseq
    %v617 = vand.u32 %v616, 127
    %vm618 = vcmp.lt.s32.totalorder %v617, 16
    %vm619 = vcmp.ge.s32.totalorder %v617, 1
    %vm620 = vmand %vm618, %vm619
    %v621 = vsel %vm620, %v612, -1e+30
    %622 = vmax.xlane.f32.xlu0 %v621
    %v623 = vpop.xlane.xlu0 %622
    %vm624 = vcmp.eq.f32.partialorder %v621, %v623
    %v625 = vcvt.s32.f32 %v617
    %v626 = vsel %vm624, %v625, 128.0
    %627 = vmin.xlane.f32.xlu0 %v626
    %v628 = vpop.xlane.xlu0 %627
    %v629 = vcvt.f32.s32.to.zero.pseudo %v628
    %v630 = vsel %vm618, %v612, -1e+30
    %631 = vmax.xlane.f32.xlu0 %v630
    %v632 = vpop.xlane.xlu0 %631
    %v633 = vsub.f32 %v630, %v632
    %v634 = vmul.f32 %v633, 1.442695
    %v635 = vpow.pop %v634
    %636 = vadd.xlane.f32.xlu0 %v635
    %v637 = vpop.xlane.xlu0 %636
    %v638 = vrcp.pop %v637
    %v639 = vmul.f32 %v635, %v638
    %vm640 = vcmp.eq.s32.totalorder %v617, %v629
    %v641 = vsel %vm640, %v639, 0.0
    %642 = vadd.xlane.f32.xlu0 %v641
    %v643 = vpop.xlane.xlu0 %642
    %vm644 = vcmp.eq.s32.totalorder %v617, 0
    %vm645 = vcmp.eq.s32.totalorder %v617, 1
    %v646 = vsel %vm645, %v643, 0.0
    %v647 = vsel %vm644, %v628, %v646
    %648 = vst [vmem:[%s55] sm:$0xff] %v647
    %v649 = vld [vmem:[%s13] sm:$0xff]
    %v650 = vpack.c.bf16 %v649, %v649
    %v651 = vld [vmem:[#allocation7] sm:$0xf]
    %v652 = vld [vmem:[#allocation7 + $0x4] sm:$0xf]
    %v653 = vld [vmem:[#allocation7 + $0x8] sm:$0xf]
    %v654 = vld [vmem:[#allocation7 + $0xc] sm:$0xf]
    %v655 = vld [vmem:[#allocation7 + $0x10] sm:$0xf]
    %v656 = vld [vmem:[#allocation7 + $0x14] sm:$0xf]
    %v657 = vld [vmem:[#allocation7 + $0x18] sm:$0xf]
    %v658 = vld [vmem:[#allocation7 + $0x1c] sm:$0xf]
    %v659 = vld [vmem:[#allocation7 + $0x20] sm:$0xf]
    %v660 = vld [vmem:[#allocation7 + $0x24] sm:$0xf]
    %v661 = vld [vmem:[#allocation7 + $0x28] sm:$0xf]
    %v662 = vld [vmem:[#allocation7 + $0x2c] sm:$0xf]
    %v663 = vld [vmem:[#allocation7 + $0x30] sm:$0xf]
    %v664 = vld [vmem:[#allocation7 + $0x34] sm:$0xf]
    %v665 = vld [vmem:[#allocation7 + $0x38] sm:$0xf]
    %v666 = vld [vmem:[#allocation7 + $0x3c] sm:$0xf]
    %v667 = vld [vmem:[%s35] sm:$0x1]
    %v669 = vperm.slane %v667, 0
    %v687 = vunpack.c.l.b16 %v651
    %v688 = vunpack.c.l.b16 %v652
    %v689 = vunpack.c.l.b16 %v653
    %v690 = vunpack.c.l.b16 %v654
    %v691 = vunpack.c.l.b16 %v655
    %v692 = vunpack.c.l.b16 %v656
    %v693 = vunpack.c.l.b16 %v657
    %v694 = vunpack.c.l.b16 %v658
    %v695 = vunpack.c.l.b16 %v659
    %v696 = vunpack.c.l.b16 %v660
    %v697 = vunpack.c.l.b16 %v661
    %v698 = vunpack.c.l.b16 %v662
    %v699 = vunpack.c.l.b16 %v663
    %v700 = vunpack.c.l.b16 %v664
    %v701 = vunpack.c.l.b16 %v665
    %v702 = vunpack.c.l.b16 %v666
    %v703 = vpack.c.b16 %v688, %v687
    %v704 = vpack.c.b16 %v690, %v689
    %v705 = vpack.c.b16 %v692, %v691
    %v706 = vpack.c.b16 %v694, %v693
    %v707 = vpack.c.b16 %v696, %v695
    %v708 = vpack.c.b16 %v698, %v697
    %v709 = vpack.c.b16 %v700, %v699
    %v710 = vpack.c.b16 %v702, %v701
    %719 = vmatpush.bf16.msra.mxu0 %v710
    %720 = vmatpush.bf16.msra.mxu0 %v709
    %721 = vmatpush.bf16.msra.mxu0 %v708
    %722 = vmatpush.bf16.msra.mxu0 %v707
    %723 = vmatpush.bf16.msra.mxu0 %v706
    %724 = vmatpush.bf16.msra.mxu0 %v705
    %725 = vmatpush.bf16.msra.mxu0 %v704
    %726 = vmatpush.bf16.msra.mxu0 %v703
    %727 = vmatmul.bf16.gmra.mxu0 %v650
    %v728 = vpop.f32.mrf.mxu0
    %v729 = vadd.f32 %v669, %v728
    %v730 = vpop.f32.mrf.mxu0
    %731 = vdwg.mxu0
    %732 = vst [vmem:[%s57] sm:$0xff] %v729
    %v733 = vld [vmem:[%s9] sm:$0xff]
    %734 = vset.pattern.permute.xlu0 0
    %735 = vperm.xlu0 %734, %v733
    %v736 = vpop.permute.xlu0 %735
    %vm737 = vcmp.eq.s32.totalorder %v736, %v617
    %v738 = vsel %vm737, 1, 0
    %v739 = vcvt.s32.f32 %v738
    %v740 = vld [vmem:[%s5] sm:$0xff]
    %741 = vset.pattern.permute.xlu0 0
    %742 = vperm.xlu0 %741, %v740
    %v743 = vpop.permute.xlu0 %742
    %vm744 = vcmp.eq.s32.totalorder %v743, %v617
    %v745 = vsel %vm744, 1, 0
    %v746 = vcvt.s32.f32 %v745
    %v747 = vld [vmem:[%s7] sm:$0x1]
    %v748 = vlaneseq
    %v749 = vshrl.u32 %v748, 7
    %v750 = vperm.slane %v747, 0
    %vm751 = vcmp.eq.s32.totalorder %v750, %v749
    %v752 = vsel %vm751, 1, 0
    %v753 = vcvt.s32.f32 %v752
    %vm754 = vcmask 64512
    %v756 = vsel %vm754, %v746, 0
    %758 = vmatpush.msra.mxu0 0.0
    %759 = vmatpush.msra.mxu0 0.0
    %760 = vmatpush.msra.mxu0 0.0
    %761 = vmatpush.msra.mxu0 0.0
    %762 = vmatpush.msra.mxu0 0.0
    %763 = vmatpush.msra.mxu0 0.0
    %764 = vmatpush.msra.mxu0 0.0
    %765 = vmatpush.msra.mxu0 0.0
    %766 = vmatpush.msra.mxu0 0.0
    %767 = vmatpush.msra.mxu0 0.0
    %768 = vmatpush.msra.mxu0 0.0
    %769 = vmatpush.msra.mxu0 0.0
    %770 = vmatpush.msra.mxu0 0.0
    %771 = vmatpush.msra.mxu0 0.0
    %772 = vmatpush.msra.mxu0 0.0
    %773 = vmatpush.msra.mxu0 %v649
    %774 = vmatmul.f32.gmra.mxu0 %v756
    %v775 = vpop.f32.mrf.mxu0
    %v776 = vadd.f32 0.0, %v775
    %777 = vdwg.mxu0
    %v779 = vsel %vm754, %v753, 0
    %781 = vmatpush.msra.mxu0 0.0
    %782 = vmatpush.msra.mxu0 0.0
    %783 = vmatpush.msra.mxu0 0.0
    %784 = vmatpush.msra.mxu0 0.0
    %785 = vmatpush.msra.mxu0 0.0
    %786 = vmatpush.msra.mxu0 0.0
    %787 = vmatpush.msra.mxu0 0.0
    %788 = vmatpush.msra.mxu0 0.0
    %789 = vmatpush.msra.mxu0 0.0
    %790 = vmatpush.msra.mxu0 0.0
    %791 = vmatpush.msra.mxu0 0.0
    %792 = vmatpush.msra.mxu0 0.0
    %793 = vmatpush.msra.mxu0 0.0
    %794 = vmatpush.msra.mxu0 0.0
    %795 = vmatpush.msra.mxu0 0.0
    %796 = vmatpush.msra.mxu0 %v739
    %797 = vmatmul.f32.gmra.mxu0 %v779
    %v798 = vpop.f32.mrf.mxu0
    %v799 = vadd.f32 0.0, %v798
    %800 = vdwg.mxu0
    %v801 = vmin.f32 %v799, 1.0
    %802 = vst [vmem:[%s59] sm:$0xff] %v801
    %v803 = vadd.f32 %v532, %v776
    %v804 = vpack.c.bf16 %v803, %v803
    %v805 = vld [vmem:[#allocation8] sm:$0xf]
    %v806 = vld [vmem:[#allocation8 + $0x4] sm:$0xf]
    %v807 = vld [vmem:[#allocation8 + $0x8] sm:$0xf]
    %v808 = vld [vmem:[#allocation8 + $0xc] sm:$0xf]
    %v809 = vld [vmem:[#allocation8 + $0x10] sm:$0xf]
    %v810 = vld [vmem:[#allocation8 + $0x14] sm:$0xf]
    %v811 = vld [vmem:[#allocation8 + $0x18] sm:$0xf]
    %v812 = vld [vmem:[#allocation8 + $0x1c] sm:$0xf]
    %v813 = vld [vmem:[#allocation8 + $0x20] sm:$0xf]
    %v814 = vld [vmem:[#allocation8 + $0x24] sm:$0xf]
    %v815 = vld [vmem:[#allocation8 + $0x28] sm:$0xf]
    %v816 = vld [vmem:[#allocation8 + $0x2c] sm:$0xf]
    %v817 = vld [vmem:[#allocation8 + $0x30] sm:$0xf]
    %v818 = vld [vmem:[#allocation8 + $0x34] sm:$0xf]
    %v819 = vld [vmem:[#allocation8 + $0x38] sm:$0xf]
    %v820 = vld [vmem:[#allocation8 + $0x3c] sm:$0xf]
    %v821 = vld [vmem:[%s39] sm:$0x1]
    %v823 = vperm.slane %v821, 0
    %v841 = vunpack.c.l.b16 %v805
    %v842 = vunpack.c.l.b16 %v806
    %v843 = vunpack.c.l.b16 %v807
    %v844 = vunpack.c.l.b16 %v808
    %v845 = vunpack.c.l.b16 %v809
    %v846 = vunpack.c.l.b16 %v810
    %v847 = vunpack.c.l.b16 %v811
    %v848 = vunpack.c.l.b16 %v812
    %v849 = vunpack.c.l.b16 %v813
    %v850 = vunpack.c.l.b16 %v814
    %v851 = vunpack.c.l.b16 %v815
    %v852 = vunpack.c.l.b16 %v816
    %v853 = vunpack.c.l.b16 %v817
    %v854 = vunpack.c.l.b16 %v818
    %v855 = vunpack.c.l.b16 %v819
    %v856 = vunpack.c.l.b16 %v820
    %v857 = vpack.c.b16 %v842, %v841
    %v858 = vpack.c.b16 %v844, %v843
    %v859 = vpack.c.b16 %v846, %v845
    %v860 = vpack.c.b16 %v848, %v847
    %v861 = vpack.c.b16 %v850, %v849
    %v862 = vpack.c.b16 %v852, %v851
    %v863 = vpack.c.b16 %v854, %v853
    %v864 = vpack.c.b16 %v856, %v855
    %873 = vmatpush.bf16.msra.mxu0 %v864
    %874 = vmatpush.bf16.msra.mxu0 %v863
    %875 = vmatpush.bf16.msra.mxu0 %v862
    %876 = vmatpush.bf16.msra.mxu0 %v861
    %877 = vmatpush.bf16.msra.mxu0 %v860
    %878 = vmatpush.bf16.msra.mxu0 %v859
    %879 = vmatpush.bf16.msra.mxu0 %v858
    %880 = vmatpush.bf16.msra.mxu0 %v857
    %881 = vmatmul.bf16.gmra.mxu0 %v804
    %v882 = vpop.f32.mrf.mxu0
    %v883 = vadd.f32 %v823, %v882
    %v884 = vpop.f32.mrf.mxu0
    %885 = vdwg.mxu0
    %v886 = vmax.f32 %v883, 0.0
    %v887 = vxor.u32 %v883, 2147483648
    %v888 = vmul.f32 %v887, 1.442695
    %v889 = vpow.pop %v888
    %v890 = vadd.f32 %v889, 1.0
    %v891 = vrcp.pop %v890
    %v892 = vmul.f32 %v890, %v891
    %v893 = vsub.f32 1.0, %v892
    %v894 = vmul.f32 %v891, %v893
    %v895 = vadd.f32 %v891, %v894
    %vm896 = vweird.f32 %v890
    %vm897 = vweird.f32 %v891
    %vm898 = vmor %vm896, %vm897
    %v899 = vsel %vm898, %v891, %v895
    %v900 = vand.u32 2147483647, %v890
    %vm901 = vcmp.eq.f32.partialorder %v900, 8.507059e+37
    %v902 = vand.u32 %v890, 2147483648
    %v903 = vor.u32 1.1754944e-38, %v902
    %v904 = vsel %vm901, %v903, %v899
    %v905 = vmul.f32 1.0, %v904
    %v906 = vmax.f32 %v905, 0.0
    %908 = vset.pattern.permute.xlu0 0
    %909 = vperm.xlu0 %908, %v886
    %v910 = vpop.permute.xlu0 %909
    %v912 = vmul.f32 %v910, %v776
    %v913 = vadd.f32 %v532, %v912
    %915 = vset.pattern.permute.xlu0 1
    %916 = vperm.xlu0 %915, %v906
    %v917 = vpop.permute.xlu0 %916
    %v919 = vmul.f32 %v917, %v776
    %v920 = vadd.f32 %v532, %v919
    %v921 = vld [vmem:[%s11] sm:$0xff]
    %v922 = vld [vmem:[%s11 + $0x8] sm:$0xff]
    %v923 = vld [vmem:[%s11 + $0x10] sm:$0xff]
    %v924 = vld [vmem:[%s11 + $0x18] sm:$0xff]
    %925 = vset.pattern.permute.xlu0 1
    %926 = vperm.xlu0 %925, %v921
    %v927 = vpop.permute.xlu0 %926
    %928 = vset.pattern.permute.xlu0 1
    %929 = vperm.xlu0 %928, %v922
    %v930 = vpop.permute.xlu0 %929
    %931 = vset.pattern.permute.xlu0 1
    %932 = vperm.xlu0 %931, %v923
    %v933 = vpop.permute.xlu0 %932
    %934 = vset.pattern.permute.xlu0 1
    %935 = vperm.xlu0 %934, %v924
    %v936 = vpop.permute.xlu0 %935
    %vm937 = vcmp.eq.s32.totalorder %v927, %v617
    %vm938 = vcmp.eq.s32.totalorder %v930, %v617
    %vm939 = vcmp.eq.s32.totalorder %v933, %v617
    %vm940 = vcmp.eq.s32.totalorder %v936, %v617
    %v941 = vsel %vm937, 1, 0
    %v942 = vsel %vm938, 1, 0
    %v943 = vsel %vm939, 1, 0
    %v944 = vsel %vm940, 1, 0
    %v945 = vcvt.s32.f32 %v941
    %v946 = vcvt.s32.f32 %v942
    %v947 = vcvt.s32.f32 %v943
    %v948 = vcvt.s32.f32 %v944
    %949 = vset.pattern.permute.xlu0 2
    %950 = vperm.xlu0 %949, %v921
    %v951 = vpop.permute.xlu0 %950
    %952 = vset.pattern.permute.xlu0 2
    %953 = vperm.xlu0 %952, %v922
    %v954 = vpop.permute.xlu0 %953
    %955 = vset.pattern.permute.xlu0 2
    %956 = vperm.xlu0 %955, %v923
    %v957 = vpop.permute.xlu0 %956
    %958 = vset.pattern.permute.xlu0 2
    %959 = vperm.xlu0 %958, %v924
    %v960 = vpop.permute.xlu0 %959
    %vm961 = vcmp.eq.s32.totalorder %v951, %v617
    %vm962 = vcmp.eq.s32.totalorder %v954, %v617
    %vm963 = vcmp.eq.s32.totalorder %v957, %v617
    %vm964 = vcmp.eq.s32.totalorder %v960, %v617
    %v965 = vsel %vm961, 1, 0
    %v966 = vsel %vm962, 1, 0
    %v967 = vsel %vm963, 1, 0
    %v968 = vsel %vm964, 1, 0
    %v969 = vcvt.s32.f32 %v965
    %v970 = vcvt.s32.f32 %v966
    %v971 = vcvt.s32.f32 %v967
    %v972 = vcvt.s32.f32 %v968
    %v973 = vpack.c.bf16 %v946, %v945
    %v974 = vpack.c.bf16 %v948, %v947
    %v975 = vpack.c.bf16 %v913, %v913
    %v977 = vsel %vm754, %v973, 0
    %v980 = vsel %vm754, %v974, 0
    %vm982 = vcmask 1043456
    %v984 = vsel %vm982, %v975, 0
    %986 = vmatpush.bf16.msra.mxu0 0
    %987 = vmatpush.bf16.msra.mxu0 0
    %988 = vmatpush.bf16.msra.mxu0 0
    %989 = vmatpush.bf16.msra.mxu0 0
    %990 = vmatpush.bf16.msra.mxu0 0
    %991 = vmatpush.bf16.msra.mxu0 0
    %992 = vmatpush.bf16.msra.mxu0 0
    %993 = vmatpush.bf16.msra.mxu0 %v984
    %994 = vmatmul.bf16.gmra.mxu0 %v977
    %v995 = vpop.f32.mrf.mxu0
    %v996 = vadd.f32 0.0, %v995
    %v997 = vpop.f32.mrf.mxu0
    %v998 = vadd.f32 0.0, %v997
    %999 = vmatmul.bf16.gmra.mxu0 %v980
    %v1000 = vpop.f32.mrf.mxu0
    %v1001 = vadd.f32 0.0, %v1000
    %v1002 = vpop.f32.mrf.mxu0
    %v1003 = vadd.f32 0.0, %v1002
    %1004 = vdwg.mxu0
    %v1005 = vpack.c.bf16 %v970, %v969
    %v1006 = vpack.c.bf16 %v972, %v971
    %v1007 = vpack.c.bf16 %v920, %v920
    %v1009 = vsel %vm754, %v1005, 0
    %v1012 = vsel %vm754, %v1006, 0
    %v1015 = vsel %vm982, %v1007, 0
    %1017 = vmatpush.bf16.msra.mxu0 0
    %1018 = vmatpush.bf16.msra.mxu0 0
    %1019 = vmatpush.bf16.msra.mxu0 0
    %1020 = vmatpush.bf16.msra.mxu0 0
    %1021 = vmatpush.bf16.msra.mxu0 0
    %1022 = vmatpush.bf16.msra.mxu0 0
    %1023 = vmatpush.bf16.msra.mxu0 0
    %1024 = vmatpush.bf16.msra.mxu0 %v1015
    %1025 = vmatmul.bf16.gmra.mxu0 %v1009
    %v1026 = vpop.f32.mrf.mxu0
    %v1027 = vadd.f32 0.0, %v1026
    %v1028 = vpop.f32.mrf.mxu0
    %v1029 = vadd.f32 0.0, %v1028
    %1030 = vmatmul.bf16.gmra.mxu0 %v1012
    %v1031 = vpop.f32.mrf.mxu0
    %v1032 = vadd.f32 0.0, %v1031
    %v1033 = vpop.f32.mrf.mxu0
    %v1034 = vadd.f32 0.0, %v1033
    %1035 = vdwg.mxu0
    %vm1036 = vcmp.eq.s32.totalorder %v617, 4
    %v1037 = vsel %vm1036, %v628, %v320
    %v1039 = vsel %vm754, %v945, 0
    %v1042 = vsel %vm754, %v946, 0
    %v1045 = vsel %vm754, %v947, 0
    %v1048 = vsel %vm754, %v948, 0
    %1050 = vmatpush.msra.mxu0 0.0
    %1051 = vmatpush.msra.mxu0 0.0
    %1052 = vmatpush.msra.mxu0 0.0
    %1053 = vmatpush.msra.mxu0 0.0
    %1054 = vmatpush.msra.mxu0 0.0
    %1055 = vmatpush.msra.mxu0 0.0
    %1056 = vmatpush.msra.mxu0 0.0
    %1057 = vmatpush.msra.mxu0 0.0
    %1058 = vmatpush.msra.mxu0 0.0
    %1059 = vmatpush.msra.mxu0 0.0
    %1060 = vmatpush.msra.mxu0 0.0
    %1061 = vmatpush.msra.mxu0 0.0
    %1062 = vmatpush.msra.mxu0 0.0
    %1063 = vmatpush.msra.mxu0 0.0
    %1064 = vmatpush.msra.mxu0 0.0
    %1065 = vmatpush.msra.mxu0 %v1037
    %1066 = vmatmul.f32.gmra.mxu0 %v1039
    %v1067 = vpop.f32.mrf.mxu0
    %v1068 = vadd.f32 0.0, %v1067
    %1069 = vmatmul.f32.gmra.mxu0 %v1042
    %v1070 = vpop.f32.mrf.mxu0
    %v1071 = vadd.f32 0.0, %v1070
    %1072 = vmatmul.f32.gmra.mxu0 %v1045
    %v1073 = vpop.f32.mrf.mxu0
    %v1074 = vadd.f32 0.0, %v1073
    %1075 = vmatmul.f32.gmra.mxu0 %v1048
    %v1076 = vpop.f32.mrf.mxu0
    %v1077 = vadd.f32 0.0, %v1076
    %1078 = vdwg.mxu0
    %v1080 = vsel %vm754, %v969, 0
    %v1083 = vsel %vm754, %v970, 0
    %v1086 = vsel %vm754, %v971, 0
    %v1089 = vsel %vm754, %v972, 0
    %1091 = vmatpush.msra.mxu0 0.0
    %1092 = vmatpush.msra.mxu0 0.0
    %1093 = vmatpush.msra.mxu0 0.0
    %1094 = vmatpush.msra.mxu0 0.0
    %1095 = vmatpush.msra.mxu0 0.0
    %1096 = vmatpush.msra.mxu0 0.0
    %1097 = vmatpush.msra.mxu0 0.0
    %1098 = vmatpush.msra.mxu0 0.0
    %1099 = vmatpush.msra.mxu0 0.0
    %1100 = vmatpush.msra.mxu0 0.0
    %1101 = vmatpush.msra.mxu0 0.0
    %1102 = vmatpush.msra.mxu0 0.0
    %1103 = vmatpush.msra.mxu0 0.0
    %1104 = vmatpush.msra.mxu0 0.0
    %1105 = vmatpush.msra.mxu0 0.0
    %1106 = vmatpush.msra.mxu0 %v1037
    %1107 = vmatmul.f32.gmra.mxu0 %v1080
    %v1108 = vpop.f32.mrf.mxu0
    %v1109 = vadd.f32 0.0, %v1108
    %1110 = vmatmul.f32.gmra.mxu0 %v1083
    %v1111 = vpop.f32.mrf.mxu0
    %v1112 = vadd.f32 0.0, %v1111
    %1113 = vmatmul.f32.gmra.mxu0 %v1086
    %v1114 = vpop.f32.mrf.mxu0
    %v1115 = vadd.f32 0.0, %v1114
    %1116 = vmatmul.f32.gmra.mxu0 %v1089
    %v1117 = vpop.f32.mrf.mxu0
    %v1118 = vadd.f32 0.0, %v1117
    %1119 = vdwg.mxu0
    %1124 = vrot.lane.b32.xlu0 %v1068, 2
    %v1125 = vpop.permute.xlu0 %1124
    %1126 = vrot.lane.b32.xlu0 %v1071, 2
    %v1127 = vpop.permute.xlu0 %1126
    %1128 = vrot.lane.b32.xlu0 %v1074, 2
    %v1129 = vpop.permute.xlu0 %1128
    %1130 = vrot.lane.b32.xlu0 %v1077, 2
    %v1131 = vpop.permute.xlu0 %1130
    %v1136 = vsub.f32 %v1068, %v1125
    %v1137 = vsub.f32 %v1071, %v1127
    %v1138 = vsub.f32 %v1074, %v1129
    %v1139 = vsub.f32 %v1077, %v1131
    %v1140 = vadd.f32 %v1136, 1.0
    %v1141 = vadd.f32 %v1137, 1.0
    %v1142 = vadd.f32 %v1138, 1.0
    %v1143 = vadd.f32 %v1139, 1.0
    %1148 = vrot.lane.b32.xlu0 %v1109, 126
    %v1149 = vpop.permute.xlu0 %1148
    %1150 = vrot.lane.b32.xlu0 %v1112, 126
    %v1151 = vpop.permute.xlu0 %1150
    %1152 = vrot.lane.b32.xlu0 %v1115, 126
    %v1153 = vpop.permute.xlu0 %1152
    %1154 = vrot.lane.b32.xlu0 %v1118, 126
    %v1155 = vpop.permute.xlu0 %1154
    %v1160 = vadd.f32 %v1109, %v1149
    %v1161 = vadd.f32 %v1112, %v1151
    %v1162 = vadd.f32 %v1115, %v1153
    %v1163 = vadd.f32 %v1118, %v1155
    %v1164 = vmul.f32 %v1160, 0.5
    %v1165 = vmul.f32 %v1161, 0.5
    %v1166 = vmul.f32 %v1162, 0.5
    %v1167 = vmul.f32 %v1163, 0.5
    %1168 = vrot.lane.b32.xlu0 %v1109, 2
    %v1169 = vpop.permute.xlu0 %1168
    %1170 = vrot.lane.b32.xlu0 %v1112, 2
    %v1171 = vpop.permute.xlu0 %1170
    %1172 = vrot.lane.b32.xlu0 %v1115, 2
    %v1173 = vpop.permute.xlu0 %1172
    %1174 = vrot.lane.b32.xlu0 %v1118, 2
    %v1175 = vpop.permute.xlu0 %1174
    %v1180 = vsub.f32 %v1109, %v1169
    %v1181 = vsub.f32 %v1112, %v1171
    %v1182 = vsub.f32 %v1115, %v1173
    %v1183 = vsub.f32 %v1118, %v1175
    %v1184 = vadd.f32 %v1180, 1.0
    %v1185 = vadd.f32 %v1181, 1.0
    %v1186 = vadd.f32 %v1182, 1.0
    %v1187 = vadd.f32 %v1183, 1.0
    %v1188 = vrcp.pop %v1184
    %v1189 = vrcp.pop %v1185
    %v1190 = vrcp.pop %v1186
    %v1191 = vrcp.pop %v1187
    %v1192 = vsub.f32 %v1068, %v1164
    %v1193 = vsub.f32 %v1071, %v1165
    %v1194 = vsub.f32 %v1074, %v1166
    %v1195 = vsub.f32 %v1077, %v1167
    %1200 = vrot.lane.b32.xlu0 %v1188, 126
    %v1201 = vpop.permute.xlu0 %1200
    %1202 = vrot.lane.b32.xlu0 %v1189, 126
    %v1203 = vpop.permute.xlu0 %1202
    %1204 = vrot.lane.b32.xlu0 %v1190, 126
    %v1205 = vpop.permute.xlu0 %1204
    %1206 = vrot.lane.b32.xlu0 %v1191, 126
    %v1207 = vpop.permute.xlu0 %1206
    %v1212 = vmul.f32 %v1192, %v1201
    %v1213 = vmul.f32 %v1193, %v1203
    %v1214 = vmul.f32 %v1194, %v1205
    %v1215 = vmul.f32 %v1195, %v1207
    %1220 = vrot.lane.b32.xlu0 %v1164, 2
    %v1221 = vpop.permute.xlu0 %1220
    %1222 = vrot.lane.b32.xlu0 %v1165, 2
    %v1223 = vpop.permute.xlu0 %1222
    %1224 = vrot.lane.b32.xlu0 %v1166, 2
    %v1225 = vpop.permute.xlu0 %1224
    %1226 = vrot.lane.b32.xlu0 %v1167, 2
    %v1227 = vpop.permute.xlu0 %1226
    %v1232 = vsub.f32 %v1068, %v1221
    %v1233 = vsub.f32 %v1071, %v1223
    %v1234 = vsub.f32 %v1074, %v1225
    %v1235 = vsub.f32 %v1077, %v1227
    %v1236 = vmul.f32 %v1232, %v1188
    %v1237 = vmul.f32 %v1233, %v1189
    %v1238 = vmul.f32 %v1234, %v1190
    %v1239 = vmul.f32 %v1235, %v1191
    %1244 = vrot.lane.b32.xlu0 %v1140, 127
    %v1245 = vpop.permute.xlu0 %1244
    %1246 = vrot.lane.b32.xlu0 %v1141, 127
    %v1247 = vpop.permute.xlu0 %1246
    %1248 = vrot.lane.b32.xlu0 %v1142, 127
    %v1249 = vpop.permute.xlu0 %1248
    %1250 = vrot.lane.b32.xlu0 %v1143, 127
    %v1251 = vpop.permute.xlu0 %1250
    %v1256 = vmul.f32 %v1140, %v1245
    %v1257 = vmul.f32 %v1141, %v1247
    %v1258 = vmul.f32 %v1142, %v1249
    %v1259 = vmul.f32 %v1143, %v1251
    %v1260 = vmul.f32 %v1256, %v1188
    %v1261 = vmul.f32 %v1257, %v1189
    %v1262 = vmul.f32 %v1258, %v1190
    %v1263 = vmul.f32 %v1259, %v1191
    %1264 = vrot.lane.b32.xlu0 %v1188, 127
    %v1265 = vpop.permute.xlu0 %1264
    %1266 = vrot.lane.b32.xlu0 %v1189, 127
    %v1267 = vpop.permute.xlu0 %1266
    %1268 = vrot.lane.b32.xlu0 %v1190, 127
    %v1269 = vpop.permute.xlu0 %1268
    %1270 = vrot.lane.b32.xlu0 %v1191, 127
    %v1271 = vpop.permute.xlu0 %1270
    %v1276 = vmul.f32 %v1260, %v1265
    %v1277 = vmul.f32 %v1261, %v1267
    %v1278 = vmul.f32 %v1262, %v1269
    %v1279 = vmul.f32 %v1263, %v1271
    %v1280 = vld [vmem:[%s41] sm:$0x1]
    %1282 = vset.pattern.permute.xlu0 0
    %1283 = vperm.xlu0 %1282, %v1212
    %v1284 = vpop.permute.xlu0 %1283
    %1287 = vset.pattern.permute.xlu0 0
    %1288 = vperm.xlu0 %1287, %v1213
    %v1289 = vpop.permute.xlu0 %1288
    %1292 = vset.pattern.permute.xlu0 0
    %1293 = vperm.xlu0 %1292, %v1214
    %v1294 = vpop.permute.xlu0 %1293
    %1297 = vset.pattern.permute.xlu0 0
    %1298 = vperm.xlu0 %1297, %v1215
    %v1299 = vpop.permute.xlu0 %1298
    %v1301 = vperm.slane %v1280, 0
    %v1302 = vmul.f32 %v1284, %v1301
    %v1303 = vmul.f32 %v1289, %v1301
    %v1304 = vmul.f32 %v1294, %v1301
    %v1305 = vmul.f32 %v1299, %v1301
    %v1306 = vld [vmem:[%s41 + $0x1] sm:$0x1]
    %1307 = vset.pattern.permute.xlu0 1
    %1308 = vperm.xlu0 %1307, %v1212
    %v1309 = vpop.permute.xlu0 %1308
    %1311 = vset.pattern.permute.xlu0 1
    %1312 = vperm.xlu0 %1311, %v1213
    %v1313 = vpop.permute.xlu0 %1312
    %1315 = vset.pattern.permute.xlu0 1
    %1316 = vperm.xlu0 %1315, %v1214
    %v1317 = vpop.permute.xlu0 %1316
    %1319 = vset.pattern.permute.xlu0 1
    %1320 = vperm.xlu0 %1319, %v1215
    %v1321 = vpop.permute.xlu0 %1320
    %v1323 = vperm.slane %v1306, 0
    %v1324 = vmul.f32 %v1309, %v1323
    %v1325 = vmul.f32 %v1313, %v1323
    %v1326 = vmul.f32 %v1317, %v1323
    %v1327 = vmul.f32 %v1321, %v1323
    %v1328 = vadd.f32 %v1302, %v1324
    %v1329 = vadd.f32 %v1303, %v1325
    %v1330 = vadd.f32 %v1304, %v1326
    %v1331 = vadd.f32 %v1305, %v1327
    %v1332 = vld [vmem:[%s41 + $0x2] sm:$0x1]
    %1334 = vset.pattern.permute.xlu0 2
    %1335 = vperm.xlu0 %1334, %v1236
    %v1336 = vpop.permute.xlu0 %1335
    %1339 = vset.pattern.permute.xlu0 2
    %1340 = vperm.xlu0 %1339, %v1237
    %v1341 = vpop.permute.xlu0 %1340
    %1344 = vset.pattern.permute.xlu0 2
    %1345 = vperm.xlu0 %1344, %v1238
    %v1346 = vpop.permute.xlu0 %1345
    %1349 = vset.pattern.permute.xlu0 2
    %1350 = vperm.xlu0 %1349, %v1239
    %v1351 = vpop.permute.xlu0 %1350
    %v1353 = vperm.slane %v1332, 0
    %v1354 = vmul.f32 %v1336, %v1353
    %v1355 = vmul.f32 %v1341, %v1353
    %v1356 = vmul.f32 %v1346, %v1353
    %v1357 = vmul.f32 %v1351, %v1353
    %v1358 = vadd.f32 %v1328, %v1354
    %v1359 = vadd.f32 %v1329, %v1355
    %v1360 = vadd.f32 %v1330, %v1356
    %v1361 = vadd.f32 %v1331, %v1357
    %v1362 = vld [vmem:[%s41 + $0x3] sm:$0x1]
    %1363 = vset.pattern.permute.xlu0 3
    %1364 = vperm.xlu0 %1363, %v1236
    %v1365 = vpop.permute.xlu0 %1364
    %1367 = vset.pattern.permute.xlu0 3
    %1368 = vperm.xlu0 %1367, %v1237
    %v1369 = vpop.permute.xlu0 %1368
    %1371 = vset.pattern.permute.xlu0 3
    %1372 = vperm.xlu0 %1371, %v1238
    %v1373 = vpop.permute.xlu0 %1372
    %1375 = vset.pattern.permute.xlu0 3
    %1376 = vperm.xlu0 %1375, %v1239
    %v1377 = vpop.permute.xlu0 %1376
    %v1379 = vperm.slane %v1362, 0
    %v1380 = vmul.f32 %v1365, %v1379
    %v1381 = vmul.f32 %v1369, %v1379
    %v1382 = vmul.f32 %v1373, %v1379
    %v1383 = vmul.f32 %v1377, %v1379
    %v1384 = vadd.f32 %v1358, %v1380
    %v1385 = vadd.f32 %v1359, %v1381
    %v1386 = vadd.f32 %v1360, %v1382
    %v1387 = vadd.f32 %v1361, %v1383
    %v1388 = vld [vmem:[%s41 + $0x4] sm:$0x1]
    %1390 = vset.pattern.permute.xlu0 2
    %1391 = vperm.xlu0 %1390, %v1276
    %v1392 = vpop.permute.xlu0 %1391
    %1395 = vset.pattern.permute.xlu0 2
    %1396 = vperm.xlu0 %1395, %v1277
    %v1397 = vpop.permute.xlu0 %1396
    %1400 = vset.pattern.permute.xlu0 2
    %1401 = vperm.xlu0 %1400, %v1278
    %v1402 = vpop.permute.xlu0 %1401
    %1405 = vset.pattern.permute.xlu0 2
    %1406 = vperm.xlu0 %1405, %v1279
    %v1407 = vpop.permute.xlu0 %1406
    %v1409 = vperm.slane %v1388, 0
    %v1410 = vmul.f32 %v1392, %v1409
    %v1411 = vmul.f32 %v1397, %v1409
    %v1412 = vmul.f32 %v1402, %v1409
    %v1413 = vmul.f32 %v1407, %v1409
    %v1414 = vadd.f32 %v1384, %v1410
    %v1415 = vadd.f32 %v1385, %v1411
    %v1416 = vadd.f32 %v1386, %v1412
    %v1417 = vadd.f32 %v1387, %v1413
    %v1418 = vld [vmem:[%s43] sm:$0x1]
    %v1420 = vperm.slane %v1418, 0
    %v1422 = vadd.f32 %v1414, %v1420
    %v1423 = vadd.f32 %v1415, %v1420
    %v1424 = vadd.f32 %v1416, %v1420
    %v1425 = vadd.f32 %v1417, %v1420
    %v1426 = vmax.f32 %v1422, 0.0
    %v1427 = vmax.f32 %v1423, 0.0
    %v1428 = vmax.f32 %v1424, 0.0
    %v1429 = vmax.f32 %v1425, 0.0
    %v1430 = vmul.f32 %v996, %v1027
    %v1431 = vmul.f32 %v998, %v1029
    %v1432 = vmul.f32 %v1001, %v1032
    %v1433 = vmul.f32 %v1003, %v1034
    %v1434 = vld [vmem:[%s15] sm:$0xf]
    %v1435 = vld [vmem:[%s15 + $0x4] sm:$0xf]
    %v1436 = vld [vmem:[%s15 + $0x8] sm:$0xf]
    %v1437 = vld [vmem:[%s15 + $0xc] sm:$0xf]
    %v1438 = vunpack.c.l.bf16 %v1434
    %v1439 = vunpack.c.l.bf16 %v1435
    %v1440 = vunpack.c.l.bf16 %v1436
    %v1441 = vunpack.c.l.bf16 %v1437
    %v1442 = vmul.f32 %v1430, %v1438
    %v1443 = vmul.f32 %v1431, %v1439
    %v1444 = vmul.f32 %v1432, %v1440
    %v1445 = vmul.f32 %v1433, %v1441
    %v1446 = vtanh.pop %v1442
    %v1447 = vtanh.pop %v1443
    %v1448 = vtanh.pop %v1444
    %v1449 = vtanh.pop %v1445
    %v1450 = vpack.c.bf16 %v1447, %v1446
    %v1451 = vpack.c.bf16 %v1449, %v1448
    %v1452 = vld [vmem:[#allocation10] sm:$0xf]
    %v1453 = vld [vmem:[#allocation10 + $0x4] sm:$0xf]
    %v1454 = vld [vmem:[#allocation10 + $0x8] sm:$0xf]
    %v1455 = vld [vmem:[#allocation10 + $0xc] sm:$0xf]
    %v1456 = vld [vmem:[#allocation10 + $0x10] sm:$0xf]
    %v1457 = vld [vmem:[#allocation10 + $0x14] sm:$0xf]
    %v1458 = vld [vmem:[#allocation10 + $0x18] sm:$0xf]
    %v1459 = vld [vmem:[#allocation10 + $0x1c] sm:$0xf]
    %v1460 = vld [vmem:[#allocation10 + $0x20] sm:$0xf]
    %v1461 = vld [vmem:[#allocation10 + $0x24] sm:$0xf]
    %v1462 = vld [vmem:[#allocation10 + $0x28] sm:$0xf]
    %v1463 = vld [vmem:[#allocation10 + $0x2c] sm:$0xf]
    %v1464 = vld [vmem:[#allocation10 + $0x30] sm:$0xf]
    %v1465 = vld [vmem:[#allocation10 + $0x34] sm:$0xf]
    %v1466 = vld [vmem:[#allocation10 + $0x38] sm:$0xf]
    %v1467 = vld [vmem:[#allocation10 + $0x3c] sm:$0xf]
    %v1468 = vtanh.pop %v1426
    %v1469 = vtanh.pop %v1427
    %v1470 = vtanh.pop %v1428
    %v1471 = vtanh.pop %v1429
    %v1472 = vpack.c.bf16 %v1469, %v1468
    %v1473 = vpack.c.bf16 %v1471, %v1470
    %v1474 = vld [vmem:[#allocation11] sm:$0xf]
    %v1475 = vld [vmem:[#allocation11 + $0x4] sm:$0xf]
    %v1476 = vld [vmem:[#allocation11 + $0x8] sm:$0xf]
    %v1477 = vld [vmem:[#allocation11 + $0xc] sm:$0xf]
    %v1478 = vld [vmem:[#allocation11 + $0x10] sm:$0xf]
    %v1479 = vld [vmem:[#allocation11 + $0x14] sm:$0xf]
    %v1480 = vld [vmem:[#allocation11 + $0x18] sm:$0xf]
    %v1481 = vld [vmem:[#allocation11 + $0x1c] sm:$0xf]
    %v1482 = vld [vmem:[#allocation11 + $0x20] sm:$0xf]
    %v1483 = vld [vmem:[#allocation11 + $0x24] sm:$0xf]
    %v1484 = vld [vmem:[#allocation11 + $0x28] sm:$0xf]
    %v1485 = vld [vmem:[#allocation11 + $0x2c] sm:$0xf]
    %v1486 = vld [vmem:[#allocation11 + $0x30] sm:$0xf]
    %v1487 = vld [vmem:[#allocation11 + $0x34] sm:$0xf]
    %v1488 = vld [vmem:[#allocation11 + $0x38] sm:$0xf]
    %v1489 = vld [vmem:[#allocation11 + $0x3c] sm:$0xf]
    %v1506 = vunpack.c.l.b16 %v1474
    %v1507 = vunpack.c.l.b16 %v1475
    %v1508 = vunpack.c.l.b16 %v1476
    %v1509 = vunpack.c.l.b16 %v1477
    %v1510 = vunpack.c.l.b16 %v1478
    %v1511 = vunpack.c.l.b16 %v1479
    %v1512 = vunpack.c.l.b16 %v1480
    %v1513 = vunpack.c.l.b16 %v1481
    %v1514 = vunpack.c.l.b16 %v1482
    %v1515 = vunpack.c.l.b16 %v1483
    %v1516 = vunpack.c.l.b16 %v1484
    %v1517 = vunpack.c.l.b16 %v1485
    %v1518 = vunpack.c.l.b16 %v1486
    %v1519 = vunpack.c.l.b16 %v1487
    %v1520 = vunpack.c.l.b16 %v1488
    %v1521 = vunpack.c.l.b16 %v1489
    %v1522 = vpack.c.b16 %v1507, %v1506
    %v1523 = vpack.c.b16 %v1509, %v1508
    %v1524 = vpack.c.b16 %v1511, %v1510
    %v1525 = vpack.c.b16 %v1513, %v1512
    %v1526 = vpack.c.b16 %v1515, %v1514
    %v1527 = vpack.c.b16 %v1517, %v1516
    %v1528 = vpack.c.b16 %v1519, %v1518
    %v1529 = vpack.c.b16 %v1521, %v1520
    %1538 = vmatpush.bf16.msra.mxu0 %v1529
    %1539 = vmatpush.bf16.msra.mxu0 %v1528
    %1540 = vmatpush.bf16.msra.mxu0 %v1527
    %1541 = vmatpush.bf16.msra.mxu0 %v1526
    %1542 = vmatpush.bf16.msra.mxu0 %v1525
    %1543 = vmatpush.bf16.msra.mxu0 %v1524
    %1544 = vmatpush.bf16.msra.mxu0 %v1523
    %1545 = vmatpush.bf16.msra.mxu0 %v1522
    %1546 = vmatmul.bf16.gmra.mxu0 %v1472
    %v1547 = vpop.f32.mrf.mxu0
    %v1548 = vadd.f32 0.0, %v1547
    %v1549 = vpop.f32.mrf.mxu0
    %v1550 = vadd.f32 0.0, %v1549
    %1551 = vmatmul.bf16.gmra.mxu0 %v1473
    %v1552 = vpop.f32.mrf.mxu0
    %v1553 = vadd.f32 0.0, %v1552
    %v1554 = vpop.f32.mrf.mxu0
    %v1555 = vadd.f32 0.0, %v1554
    %1556 = vdwg.mxu0
    %v1573 = vunpack.c.l.b16 %v1452
    %v1574 = vunpack.c.l.b16 %v1453
    %v1575 = vunpack.c.l.b16 %v1454
    %v1576 = vunpack.c.l.b16 %v1455
    %v1577 = vunpack.c.l.b16 %v1456
    %v1578 = vunpack.c.l.b16 %v1457
    %v1579 = vunpack.c.l.b16 %v1458
    %v1580 = vunpack.c.l.b16 %v1459
    %v1581 = vunpack.c.l.b16 %v1460
    %v1582 = vunpack.c.l.b16 %v1461
    %v1583 = vunpack.c.l.b16 %v1462
    %v1584 = vunpack.c.l.b16 %v1463
    %v1585 = vunpack.c.l.b16 %v1464
    %v1586 = vunpack.c.l.b16 %v1465
    %v1587 = vunpack.c.l.b16 %v1466
    %v1588 = vunpack.c.l.b16 %v1467
    %v1589 = vpack.c.b16 %v1574, %v1573
    %v1590 = vpack.c.b16 %v1576, %v1575
    %v1591 = vpack.c.b16 %v1578, %v1577
    %v1592 = vpack.c.b16 %v1580, %v1579
    %v1593 = vpack.c.b16 %v1582, %v1581
    %v1594 = vpack.c.b16 %v1584, %v1583
    %v1595 = vpack.c.b16 %v1586, %v1585
    %v1596 = vpack.c.b16 %v1588, %v1587
    %1605 = vmatpush.bf16.msra.mxu0 %v1596
    %1606 = vmatpush.bf16.msra.mxu0 %v1595
    %1607 = vmatpush.bf16.msra.mxu0 %v1594
    %1608 = vmatpush.bf16.msra.mxu0 %v1593
    %1609 = vmatpush.bf16.msra.mxu0 %v1592
    %1610 = vmatpush.bf16.msra.mxu0 %v1591
    %1611 = vmatpush.bf16.msra.mxu0 %v1590
    %1612 = vmatpush.bf16.msra.mxu0 %v1589
    %1613 = vmatmul.bf16.gmra.mxu0 %v1450
    %v1614 = vpop.f32.mrf.mxu0
    %v1615 = vadd.f32 %v1548, %v1614
    %v1616 = vpop.f32.mrf.mxu0
    %v1617 = vadd.f32 %v1550, %v1616
    %1618 = vmatmul.bf16.gmra.mxu0 %v1451
    %v1619 = vpop.f32.mrf.mxu0
    %v1620 = vadd.f32 %v1553, %v1619
    %v1621 = vpop.f32.mrf.mxu0
    %v1622 = vadd.f32 %v1555, %v1621
    %1623 = vdwg.mxu0
    %v1624 = vld [vmem:[%s49] sm:$0x1]
    %v1626 = vperm.slane %v1624, 0
    %v1628 = vadd.f32 %v1615, %v1626
    %v1629 = vadd.f32 %v1617, %v1626
    %v1630 = vadd.f32 %v1620, %v1626
    %v1631 = vadd.f32 %v1622, %v1626
    %v1632 = vcvt.f32.s32.to.zero.pseudo %v1068
    %v1633 = vcvt.f32.s32.to.zero.pseudo %v1071
    %v1634 = vcvt.f32.s32.to.zero.pseudo %v1074
    %v1635 = vcvt.f32.s32.to.zero.pseudo %v1077
    %v1636 = vcvt.f32.s32.to.zero.pseudo %v1109
    %v1637 = vcvt.f32.s32.to.zero.pseudo %v1112
    %v1638 = vcvt.f32.s32.to.zero.pseudo %v1115
    %v1639 = vcvt.f32.s32.to.zero.pseudo %v1118
    %v1640 = vmul.u32 %v1632, 16
    %v1641 = vmul.u32 %v1633, 16
    %v1642 = vmul.u32 %v1634, 16
    %v1643 = vmul.u32 %v1635, 16
    %v1644 = vadd.s32 %v1640, %v1636
    %v1645 = vadd.s32 %v1641, %v1637
    %v1646 = vadd.s32 %v1642, %v1638
    %v1647 = vadd.s32 %v1643, %v1639
    %v1648 = vadd.s32 %v617, 128
    %1649 = vset.pattern.permute.xlu0 4
    %1650 = vperm.xlu0 %1649, %v1644
    %v1651 = vpop.permute.xlu0 %1650
    %1652 = vset.pattern.permute.xlu0 4
    %1653 = vperm.xlu0 %1652, %v1645
    %v1654 = vpop.permute.xlu0 %1653
    %1655 = vset.pattern.permute.xlu0 4
    %1656 = vperm.xlu0 %1655, %v1646
    %v1657 = vpop.permute.xlu0 %1656
    %1658 = vset.pattern.permute.xlu0 4
    %1659 = vperm.xlu0 %1658, %v1647
    %v1660 = vpop.permute.xlu0 %1659
    %vm1661 = vcmp.eq.s32.totalorder %v1651, %v617
    %vm1662 = vcmp.eq.s32.totalorder %v1651, %v1648
    %vm1663 = vcmp.eq.s32.totalorder %v1654, %v617
    %vm1664 = vcmp.eq.s32.totalorder %v1654, %v1648
    %vm1665 = vcmp.eq.s32.totalorder %v1657, %v617
    %vm1666 = vcmp.eq.s32.totalorder %v1657, %v1648
    %vm1667 = vcmp.eq.s32.totalorder %v1660, %v617
    %vm1668 = vcmp.eq.s32.totalorder %v1660, %v1648
    %v1669 = vsel %vm1661, 1, 0
    %v1670 = vsel %vm1662, 1, 0
    %v1671 = vsel %vm1663, 1, 0
    %v1672 = vsel %vm1664, 1, 0
    %v1673 = vsel %vm1665, 1, 0
    %v1674 = vsel %vm1666, 1, 0
    %v1675 = vsel %vm1667, 1, 0
    %v1676 = vsel %vm1668, 1, 0
    %v1677 = vcvt.s32.f32 %v1669
    %v1678 = vcvt.s32.f32 %v1670
    %v1679 = vcvt.s32.f32 %v1671
    %v1680 = vcvt.s32.f32 %v1672
    %v1681 = vcvt.s32.f32 %v1673
    %v1682 = vcvt.s32.f32 %v1674
    %v1683 = vcvt.s32.f32 %v1675
    %v1684 = vcvt.s32.f32 %v1676
    %v1685 = vld [vmem:[#allocation13] sm:$0xff]
    %v1686 = vld [vmem:[#allocation13 + $0x8] sm:$0xff]
    %v1687 = vld [vmem:[#allocation13 + $0x10] sm:$0xff]
    %v1688 = vld [vmem:[#allocation13 + $0x18] sm:$0xff]
    %v1689 = vld [vmem:[#allocation13 + $0x20] sm:$0xff]
    %v1690 = vld [vmem:[#allocation13 + $0x28] sm:$0xff]
    %v1691 = vld [vmem:[#allocation13 + $0x30] sm:$0xff]
    %v1692 = vld [vmem:[#allocation13 + $0x38] sm:$0xff]
    %v1693 = vld [vmem:[#allocation13 + $0x40] sm:$0xff]
    %v1694 = vld [vmem:[#allocation13 + $0x48] sm:$0xff]
    %v1695 = vld [vmem:[#allocation13 + $0x50] sm:$0xff]
    %v1696 = vld [vmem:[#allocation13 + $0x58] sm:$0xff]
    %v1697 = vld [vmem:[#allocation13 + $0x60] sm:$0xff]
    %v1698 = vld [vmem:[#allocation13 + $0x68] sm:$0xff]
    %v1699 = vld [vmem:[#allocation13 + $0x70] sm:$0xff]
    %v1700 = vld [vmem:[#allocation13 + $0x78] sm:$0xff]
    %v1701 = vld [vmem:[#allocation13 + $0x80] sm:$0xff]
    %v1702 = vld [vmem:[#allocation13 + $0x88] sm:$0xff]
    %v1703 = vld [vmem:[#allocation13 + $0x90] sm:$0xff]
    %v1704 = vld [vmem:[#allocation13 + $0x98] sm:$0xff]
    %v1705 = vld [vmem:[#allocation13 + $0xa0] sm:$0xff]
    %v1706 = vld [vmem:[#allocation13 + $0xa8] sm:$0xff]
    %v1707 = vld [vmem:[#allocation13 + $0xb0] sm:$0xff]
    %v1708 = vld [vmem:[#allocation13 + $0xb8] sm:$0xff]
    %v1709 = vld [vmem:[#allocation13 + $0xc0] sm:$0xff]
    %v1710 = vld [vmem:[#allocation13 + $0xc8] sm:$0xff]
    %v1711 = vld [vmem:[#allocation13 + $0xd0] sm:$0xff]
    %v1712 = vld [vmem:[#allocation13 + $0xd8] sm:$0xff]
    %v1713 = vld [vmem:[#allocation13 + $0xe0] sm:$0xff]
    %v1714 = vld [vmem:[#allocation13 + $0xe8] sm:$0xff]
    %v1715 = vld [vmem:[#allocation13 + $0xf0] sm:$0xff]
    %v1716 = vld [vmem:[#allocation13 + $0xf8] sm:$0xff]
    %1717 = vmatpush.msra.mxu0 %v1700
    %1718 = vmatpush.msra.mxu0 %v1699
    %1719 = vmatpush.msra.mxu0 %v1698
    %1720 = vmatpush.msra.mxu0 %v1697
    %1721 = vmatpush.msra.mxu0 %v1696
    %1722 = vmatpush.msra.mxu0 %v1695
    %1723 = vmatpush.msra.mxu0 %v1694
    %1724 = vmatpush.msra.mxu0 %v1693
    %1725 = vmatpush.msra.mxu0 %v1692
    %1726 = vmatpush.msra.mxu0 %v1691
    %1727 = vmatpush.msra.mxu0 %v1690
    %1728 = vmatpush.msra.mxu0 %v1689
    %1729 = vmatpush.msra.mxu0 %v1688
    %1730 = vmatpush.msra.mxu0 %v1687
    %1731 = vmatpush.msra.mxu0 %v1686
    %1732 = vmatpush.msra.mxu0 %v1685
    %1733 = vmatmul.f32.gmra.mxu0 %v1677
    %v1734 = vpop.f32.mrf.mxu0
    %v1735 = vadd.f32 0.0, %v1734
    %1736 = vmatmul.f32.gmra.mxu0 %v1679
    %v1737 = vpop.f32.mrf.mxu0
    %v1738 = vadd.f32 0.0, %v1737
    %1739 = vmatmul.f32.gmra.mxu0 %v1681
    %v1740 = vpop.f32.mrf.mxu0
    %v1741 = vadd.f32 0.0, %v1740
    %1742 = vmatmul.f32.gmra.mxu0 %v1683
    %v1743 = vpop.f32.mrf.mxu0
    %v1744 = vadd.f32 0.0, %v1743
    %1745 = vdwg.mxu0
    %1746 = vmatpush.msra.mxu0 %v1716
    %1747 = vmatpush.msra.mxu0 %v1715
    %1748 = vmatpush.msra.mxu0 %v1714
    %1749 = vmatpush.msra.mxu0 %v1713
    %1750 = vmatpush.msra.mxu0 %v1712
    %1751 = vmatpush.msra.mxu0 %v1711
    %1752 = vmatpush.msra.mxu0 %v1710
    %1753 = vmatpush.msra.mxu0 %v1709
    %1754 = vmatpush.msra.mxu0 %v1708
    %1755 = vmatpush.msra.mxu0 %v1707
    %1756 = vmatpush.msra.mxu0 %v1706
    %1757 = vmatpush.msra.mxu0 %v1705
    %1758 = vmatpush.msra.mxu0 %v1704
    %1759 = vmatpush.msra.mxu0 %v1703
    %1760 = vmatpush.msra.mxu0 %v1702
    %1761 = vmatpush.msra.mxu0 %v1701
    %1762 = vmatmul.f32.gmra.mxu0 %v1678
    %v1763 = vpop.f32.mrf.mxu0
    %v1764 = vadd.f32 %v1735, %v1763
    %1765 = vmatmul.f32.gmra.mxu0 %v1680
    %v1766 = vpop.f32.mrf.mxu0
    %v1767 = vadd.f32 %v1738, %v1766
    %1768 = vmatmul.f32.gmra.mxu0 %v1682
    %v1769 = vpop.f32.mrf.mxu0
    %v1770 = vadd.f32 %v1741, %v1769
    %1771 = vmatmul.f32.gmra.mxu0 %v1684
    %v1772 = vpop.f32.mrf.mxu0
    %v1773 = vadd.f32 %v1744, %v1772
    %1774 = vdwg.mxu0
    %v1775 = vadd.f32 %v1628, %v1764
    %v1776 = vadd.f32 %v1629, %v1767
    %v1777 = vadd.f32 %v1630, %v1770
    %v1778 = vadd.f32 %v1631, %v1773
    %1779 = vst [vmem:[%s61] sm:$0xff] %v1775
    %1780 = vst [vmem:[%s61 + $0x8] sm:$0xff] %v1776
    %1781 = vst [vmem:[%s61 + $0x10] sm:$0xff] %v1777
    %1782 = vst [vmem:[%s61 + $0x18] sm:$0xff] %v1778
    %vm1783 = vcmp.lt.s32.totalorder %v617, 8
    %v1784 = vsel %vm1783, %v1775, -1e+30
    %v1785 = vsel %vm1783, %v1776, -1e+30
    %v1786 = vsel %vm1783, %v1777, -1e+30
    %v1787 = vsel %vm1783, %v1778, -1e+30
    %1788 = vmax.xlane.f32.xlu0 %v1784
    %v1789 = vpop.xlane.xlu0 %1788
    %1790 = vmax.xlane.f32.xlu0 %v1785
    %v1791 = vpop.xlane.xlu0 %1790
    %1792 = vmax.xlane.f32.xlu0 %v1786
    %v1793 = vpop.xlane.xlu0 %1792
    %1794 = vmax.xlane.f32.xlu0 %v1787
    %v1795 = vpop.xlane.xlu0 %1794
    %v1796 = vsub.f32 %v1784, %v1789
    %v1797 = vsub.f32 %v1785, %v1791
    %v1798 = vsub.f32 %v1786, %v1793
    %v1799 = vsub.f32 %v1787, %v1795
    %v1800 = vmul.f32 %v1796, 1.442695
    %v1801 = vpow.pop %v1800
    %v1802 = vmul.f32 %v1797, 1.442695
    %v1803 = vpow.pop %v1802
    %v1804 = vmul.f32 %v1798, 1.442695
    %v1805 = vpow.pop %v1804
    %v1806 = vmul.f32 %v1799, 1.442695
    %v1807 = vpow.pop %v1806
    %1808 = vadd.xlane.f32.xlu0 %v1801
    %v1809 = vpop.xlane.xlu0 %1808
    %1810 = vadd.xlane.f32.xlu0 %v1803
    %v1811 = vpop.xlane.xlu0 %1810
    %1812 = vadd.xlane.f32.xlu0 %v1805
    %v1813 = vpop.xlane.xlu0 %1812
    %1814 = vadd.xlane.f32.xlu0 %v1807
    %v1815 = vpop.xlane.xlu0 %1814
    %v1816 = vrcp.pop %v1809
    %v1817 = vrcp.pop %v1811
    %v1818 = vrcp.pop %v1813
    %v1819 = vrcp.pop %v1815
    %v1820 = vmul.f32 %v1801, %v1816
    %v1821 = vmul.f32 %v1803, %v1817
    %v1822 = vmul.f32 %v1805, %v1818
    %v1823 = vmul.f32 %v1807, %v1819
    %1824 = vst [vmem:[%s63] sm:$0xff] %v1820
    %1825 = vst [vmem:[%s63 + $0x8] sm:$0xff] %v1821
    %1826 = vst [vmem:[%s63 + $0x10] sm:$0xff] %v1822
    %1827 = vst [vmem:[%s63 + $0x18] sm:$0xff] %v1823
    // Predicated region
    $region134: #{rel_model_forward.1} parent=1 // pred_check
      _
    $region135: #{rel_model_forward.1} parent=1 // pred_check_branch
      %1829 = sbr.rel (0) target = $region137
    $region136: #{rel_model_forward.1} parent=1 // pred_region
      %1831 = vsyncadd [#allocation4], 0
      %s1833 = sshll.u32 [#allocation14], 4
      %s1834 = int_to_ptr.vmem [resolvable:$true] %s1833
      %s1835 = sshll.u32 %s53, 4
      %s1836 = int_to_ptr.hbm [resolvable:$true] %s1835
      %1838 = dma.vmem_to_hbm [thread:$0]  %s1834, 128, %s1836, [#allocation4]
    $region137: #{rel_model_forward.1} parent=1 // pred_fallthru
      _
    // Predicated region
    $region138: #{rel_model_forward.1} parent=1 // pred_check
      _
    $region139: #{rel_model_forward.1} parent=1 // pred_check_branch
      %1840 = sbr.rel (0) target = $region141
    $region140: #{rel_model_forward.1} parent=1 // pred_region
      _
    $region141: #{rel_model_forward.1} parent=1 // pred_fallthru
      _
    // Predicated region
    $region142: #{rel_model_forward.1} parent=1 // pred_check
      _
    $region143: #{rel_model_forward.1} parent=1 // pred_check_branch
      %1842 = sbr.rel (0) target = $region145
    $region144: #{rel_model_forward.1} parent=1 // pred_region
      _
    $region145: #{rel_model_forward.1} parent=1 // pred_fallthru
      _
    // Predicated region
    $region146: #{rel_model_forward.1} parent=1 // pred_check
      _
    $region147: #{rel_model_forward.1} parent=1 // pred_check_branch
      %1844 = sbr.rel (0) target = $region149
    $region148: #{rel_model_forward.1} parent=1 // pred_region
      _
    $region149: #{rel_model_forward.1} parent=1 // pred_fallthru
      _
    // Predicated region
    $region150: #{rel_model_forward.1} parent=1 // pred_check
      _
    $region151: #{rel_model_forward.1} parent=1 // pred_check_branch
      %1846 = sbr.rel (0) target = $region153
    $region152: #{rel_model_forward.1} parent=1 // pred_region
      _
    $region153: #{rel_model_forward.1} parent=1 // pred_fallthru
      _
    // Predicated region
    $region154: #{rel_model_forward.1} parent=1 // pred_check
      _
    $region155: #{rel_model_forward.1} parent=1 // pred_check_branch
      %1848 = sbr.rel (0) target = $region157
    $region156: #{rel_model_forward.1} parent=1 // pred_region
      _
    $region157: #{rel_model_forward.1} parent=1 // pred_fallthru
      _
    // Predicated region
    $region158: #{rel_model_forward.1} parent=1 // pred_check
      _
    $region159: #{rel_model_forward.1} parent=1 // pred_check_branch
      %1850 = sbr.rel (0) target = $region161
    $region160: #{rel_model_forward.1} parent=1 // pred_region
      %1852 = dma.done [#allocation4], 128
    $region161: #{rel_model_forward.1} parent=1 // pred_fallthru
      _
    // Predicated region
    $region162: #{rel_model_forward.1} parent=1 // pred_check
      _
    $region163: #{rel_model_forward.1} parent=1 // pred_check_branch
      %1854 = sbr.rel (0) target = $region165
    $region164: #{rel_model_forward.1} parent=1 // pred_region
      _
    $region165: #{rel_model_forward.1} parent=1 // pred_fallthru
      _
    // Predicated region
    $region166: #{rel_model_forward.1} parent=1 // pred_check
      _
    $region167: #{rel_model_forward.1} parent=1 // pred_check_branch
      %1856 = sbr.rel (0) target = $region169
    $region168: #{rel_model_forward.1} parent=1 // pred_region
      _
    $region169: #{rel_model_forward.1} parent=1 // pred_fallthru
      _
    // Predicated region
    $region170: #{rel_model_forward.1} parent=1 // pred_check
      _
    $region171: #{rel_model_forward.1} parent=1 // pred_check_branch
      %1858 = sbr.rel (0) target = $region173
    $region172: #{rel_model_forward.1} parent=1 // pred_region
      _
    $region173: #{rel_model_forward.1} parent=1 // pred_fallthru
      _
    // Predicated region
    $region174: #{rel_model_forward.1} parent=1 // pred_check
      _
    $region175: #{rel_model_forward.1} parent=1 // pred_check_branch
      %1860 = sbr.rel (0) target = $region177
    $region176: #{rel_model_forward.1} parent=1 // pred_region
      _
    $region177: #{rel_model_forward.1} parent=1 // pred_fallthru
      _
    // Predicated region
    $region178: #{rel_model_forward.1} parent=1 // pred_check
      _
    $region179: #{rel_model_forward.1} parent=1 // pred_check_branch
      %1862 = sbr.rel (0) target = $region181
    $region180: #{rel_model_forward.1} parent=1 // pred_region
      _
    $region181: #{rel_model_forward.1} parent=1 // pred_fallthru
      _
    %1863 = vsyncpa [#allocation3], 1
    %1864 = vsyncpa [#allocation6], 1
    %1865 = vsyncpa [#allocation9], 1
    %1866 = vsyncpa [#allocation12], 1
    %1867 = vsyncpa [#allocation4], 1

</llo_original>
